<compile_context>
chip_gen: v5e
topology: v5e:2x2
jax: 0.10.0
libtpu: 0.0.40
codegen_flags: <defaults>
</compile_context>

<pallas_src>
import functools
import math

import numpy as np
import jax
import jax.numpy as jnp
from jax.experimental import pallas as pl
from jax.experimental.pallas import tpu as pltpu


# ---------------------------------------------------------------------------
# Pallas kernel: one batch tile; weights resident in VMEM across the grid.
# ---------------------------------------------------------------------------
def ae_kernel(mask_ref, x_ref, w1_ref, b1_ref, w2_ref, b2_ref,
              wd2_ref, bd2_ref, wd1_ref, bd1_ref, wf_ref, bf_ref,
              out_ref, rec_ref, *, batch_size, tile_rows):
    cd = w1_ref.dtype                                      # matmul operand dtype

    # x[x == 0] = 1e-9 (folded into the kernel; VPU work hidden under DMA)
    x_raw = x_ref[...]                                     # (TB, N*N) f32
    x_rep = jnp.where(x_raw == 0.0, jnp.float32(1e-9), x_raw)

    # out1 = ReLU(enc1(x))   -- non-tril rows of w1_full are zero, so this
    # equals feat @ w1 on the packed lower-triangular features.
    h1 = jnp.maximum(
        jnp.dot(x_rep.astype(cd), w1_ref[...],
                preferred_element_type=jnp.float32) + b1_ref[...], 0.0)

    # out2 = enc2(out1)   (no activation, matches the PyTorch module)
    out2 = (jnp.dot(h1.astype(cd), w2_ref[...],
                    preferred_element_type=jnp.float32) + b2_ref[...])

    # rec_x = dec1(ReLU(dec2(out2)))
    hd2 = jnp.maximum(
        jnp.dot(out2.astype(cd), wd2_ref[...],
                preferred_element_type=jnp.float32) + bd2_ref[...], 0.0)
    rec_x = (jnp.dot(hd2.astype(cd), wd1_ref[...],
                     preferred_element_type=jnp.float32) + bd1_ref[...])

    # out = fcout(ReLU(out2))   -- wf is zero-padded to 128 output lanes so the
    # store is lane-dense; the wrapper slices the first 2 columns.
    a2 = jnp.maximum(out2, 0.0)
    out_ref[...] = (jnp.dot(a2.astype(cd), wf_ref[...],
                            preferred_element_type=jnp.float32) + bf_ref[...])

    # Per-tile partial sum of the masked squared reconstruction error.
    # mask_ref is 1 on lower-triangular positions, 0 elsewhere; padded batch
    # rows (beyond the true batch size) are masked out as well.
    row = (pl.program_id(0) * tile_rows
           + jax.lax.broadcasted_iota(jnp.int32, (tile_rows, 1), 0))
    row_valid = (row < batch_size).astype(jnp.float32)
    diff = (rec_x - x_rep) * mask_ref[...] * row_valid
    rec_ref[...] = jnp.reshape(jnp.sum(diff * diff), (1, 1, 1))


# ---------------------------------------------------------------------------
# One-time parameter repacking into the lane-dense N*N layout (done once,
# outside the per-call hot path).
# ---------------------------------------------------------------------------
def pack_params(params, inchannel, compute_dtype=jnp.bfloat16):
    (w1, b1, w2, b2, wd2, bd2, wd1, bd1, wf, bf) = params
    N = inchannel
    NN = N * N
    rows, cols = np.tril_indices(N)
    idx = rows * N + cols                                   # (D,) flat tril positions

    w1_full = jnp.zeros((NN, 512), jnp.float32).at[idx, :].set(w1)
    wd1_full = jnp.zeros((512, NN), jnp.float32).at[:, idx].set(wd1)
    bd1_full = jnp.zeros((1, NN), jnp.float32).at[:, idx].set(bd1)
    tril_mask = jnp.zeros((1, NN), jnp.float32).at[:, idx].set(1.0)

    wf_pad = jnp.zeros((128, 128), jnp.float32).at[:, :2].set(wf)
    bf_pad = jnp.zeros((1, 128), jnp.float32).at[:, :2].set(bf)

    cd = compute_dtype
    return dict(
        mask=tril_mask,
        w1=w1_full.astype(cd), b1=b1,
        w2=w2.astype(cd), b2=b2,
        wd2=wd2.astype(cd), bd2=bd2,
        wd1=wd1_full.astype(cd), bd1=bd1_full,
        wf=wf_pad.astype(cd), bf=bf_pad,
    )


# ---------------------------------------------------------------------------
# Wrapper: batch-tiled pallas_call with VMEM-resident weights.
# ---------------------------------------------------------------------------
def ae_forward(x, packed):
    B, N, _ = x.shape
    NN = N * N
    D = N * (N + 1) // 2                                    # true feature count

    x_flat = x.reshape(B, NN).astype(jnp.float32)

    # Batch tiling: TB rows per grid step (sublane-aligned), weights resident.
    if B > 128:
        B_pad = pl.cdiv(B, 128) * 128
        TB = 128
    else:
        B_pad = max(8, pl.cdiv(B, 8) * 8)
        TB = B_pad
    if B_pad != B:
        x_flat = jnp.pad(x_flat, ((0, B_pad - B), (0, 0)))
    num_tiles = B_pad // TB

    const = lambda i: (0, 0)                                # weights stay put
    in_specs = [
        pl.BlockSpec((1, NN), const),                       # tril mask
        pl.BlockSpec((TB, NN), lambda i: (i, 0)),           # x tile (streams)
        pl.BlockSpec((NN, 512), const),                     # w1
        pl.BlockSpec((1, 512), const),                      # b1
        pl.BlockSpec((512, 128), const),                    # w2
        pl.BlockSpec((1, 128), const),                      # b2
        pl.BlockSpec((128, 512), const),                    # wd2
        pl.BlockSpec((1, 512), const),                      # bd2
        pl.BlockSpec((512, NN), const),                     # wd1
        pl.BlockSpec((1, NN), const),                       # bd1
        pl.BlockSpec((128, 128), const),                    # wf (padded)
        pl.BlockSpec((1, 128), const),                      # bf (padded)
    ]
    out_specs = (
        pl.BlockSpec((TB, 128), lambda i: (i, 0)),          # lane-dense logits slab
        pl.BlockSpec((1, 1, 1), lambda i: (i, 0, 0)),       # per-tile rec partial
    )
    out_shape = (
        jax.ShapeDtypeStruct((B_pad, 128), jnp.float32),
        jax.ShapeDtypeStruct((num_tiles, 1, 1), jnp.float32),
    )

    kernel = functools.partial(ae_kernel, batch_size=B, tile_rows=TB)

    # NOTE: for very large N (D beyond a few thousand) w1/wd1 should be tiled
    # along the NN axis (K-reduction / output-N grid axes) to respect v7x's
    # smaller 64 MiB VMEM; at N=16 everything fits comfortably.
    out_pad, rec_part = pl.pallas_call(
        kernel,
        grid=(num_tiles,),
        in_specs=in_specs,
        out_specs=out_specs,
        out_shape=out_shape,
        compiler_params=pltpu.CompilerParams(
            dimension_semantics=("parallel",)),
    )(packed["mask"], x_flat,
      packed["w1"], packed["b1"], packed["w2"], packed["b2"],
      packed["wd2"], packed["bd2"], packed["wd1"], packed["bd1"],
      packed["wf"], packed["bf"])

    out = out_pad[:B, :2]
    rec = 0.1 * jnp.sum(rec_part) / jnp.float32(B * D)      # mean over real entries
    return out, rec


# ---------------------------------------------------------------------------
# Deterministic parameter init (nn.Linear default: U(-1/sqrt(fan_in), +))
# in the canonical packed-D layout, matching the PyTorch module.
# ---------------------------------------------------------------------------
def init_params(key, inchannel):
    D = inchannel ** 2 // 2 + inchannel // 2

    def linear(k, fan_in, fan_out):
        kw, kb = jax.random.split(k)
        bound = 1.0 / math.sqrt(fan_in)
        w = jax.random.uniform(kw, (fan_in, fan_out), jnp.float32, -bound, bound)
        b = jax.random.uniform(kb, (1, fan_out), jnp.float32, -bound, bound)
        return w, b

    k1, k2, k3, k4, k5 = jax.random.split(key, 5)
    w1, b1 = linear(k1, D, 512)        # enc1
    w2, b2 = linear(k2, 512, 128)      # enc2
    wd2, bd2 = linear(k3, 128, 512)    # dec2
    wd1, bd1 = linear(k4, 512, D)      # dec1
    wf, bf = linear(k5, 128, 2)        # fcout
    return (w1, b1, w2, b2, wd2, bd2, wd1, bd1, wf, bf)


# ---------------------------------------------------------------------------
# Pure-JAX reference (mirrors the PyTorch forward).  compute_dtype controls
# the matmul operand dtype so we can check both exact-bf16 and f32 semantics.
# ---------------------------------------------------------------------------
def ae_reference(x, params, compute_dtype=jnp.float32):
    B, N, _ = x.shape
    x_rep = jnp.where(x == 0.0, jnp.float32(1e-9), x.astype(jnp.float32))
    rows, cols = np.tril_indices(N)
    feat = x_rep[:, rows, cols]                             # (B, D)

    (w1, b1, w2, b2, wd2, bd2, wd1, bd1, wf, bf) = params
    cd = compute_dtype

    def lin(a, w, b):
        return jnp.dot(a.astype(cd), w.astype(cd),
                       preferred_element_type=jnp.float32) + b

    h1 = jnp.maximum(lin(feat, w1, b1), 0.0)
    out2 = lin(h1, w2, b2)
    hd2 = jnp.maximum(lin(out2, wd2, bd2), 0.0)
    rec_x = lin(hd2, wd1, bd1)
    out = lin(jnp.maximum(out2, 0.0), wf, bf)
    rec = 0.1 * jnp.mean((rec_x - feat) ** 2)
    return out, rec


if __name__ == "__main__":
    key = jax.random.PRNGKey(0)
    kx, kp = jax.random.split(key)

    inchannel = 16
    B = 2
    # synthetic "graph" matrices with some exact zeros (sparse-ish adjacency)
    x = jax.random.uniform(kx, (B, inchannel, inchannel), jnp.float32)
    x = jnp.where(x < 0.3, 0.0, x)

    params = init_params(kp, inchannel)
    packed = pack_params(params, inchannel, compute_dtype=jnp.bfloat16)

    out, rec = ae_forward(x, packed)
    out, rec = jax.block_until_ready((out, rec))
    assert out.shape == (B, 2)

    # 1) tight check against a reference that uses the same bf16 matmul operands
    out_m, rec_m = ae_reference(x, params, compute_dtype=jnp.bfloat16)
    assert jnp.allclose(out, out_m, atol=5e-3, rtol=1e-2), "logits mismatch (bf16 ref)"
    assert jnp.allclose(rec, rec_m, atol=1e-4, rtol=1e-2), "rec loss mismatch (bf16 ref)"

    # 2) loose sanity check against the full-f32 reference (bf16 MXU operands)
    out_f, rec_f = ae_reference(x, params, compute_dtype=jnp.float32)
    assert jnp.allclose(out, out_f, atol=1e-1, rtol=1e-1), "logits drift vs f32 ref"
    assert jnp.allclose(rec, rec_f, atol=5e-3, rtol=1e-1), "rec loss drift vs f32 ref"

    print("KERNEL_OK")
</pallas_src>

<mosaic_0001>
module attributes {stable_mosaic.version = 11 : i64} {
  func.func @ae_kernel(%arg0: i32, %arg1: memref<1x256xf32, #tpu.memory_space<vmem>>, %arg2: memref<8x256xf32, #tpu.memory_space<vmem>>, %arg3: memref<256x512xbf16, #tpu.memory_space<vmem>>, %arg4: memref<1x512xf32, #tpu.memory_space<vmem>>, %arg5: memref<512x128xbf16, #tpu.memory_space<vmem>>, %arg6: memref<1x128xf32, #tpu.memory_space<vmem>>, %arg7: memref<128x512xbf16, #tpu.memory_space<vmem>>, %arg8: memref<1x512xf32, #tpu.memory_space<vmem>>, %arg9: memref<512x256xbf16, #tpu.memory_space<vmem>>, %arg10: memref<1x256xf32, #tpu.memory_space<vmem>>, %arg11: memref<128x128xbf16, #tpu.memory_space<vmem>>, %arg12: memref<1x128xf32, #tpu.memory_space<vmem>>, %arg13: memref<8x128xf32, #tpu.memory_space<vmem>>, %arg14: memref<1x1x1xf32, #tpu.memory_space<vmem>>) attributes {dimension_semantics = [#tpu.dimension_semantics<parallel>], iteration_bounds = array<i64: 1>, scalar_prefetch = 0 : i64, scratch_operands = 0 : i64, tpu.core_type = #tpu.core_type<tc>, window_params = [{pipeline_mode = #tpu.pipeline_mode<synchronous>, transform_indices = @transform_0, window_bounds = array<i64: 1, 256>}, {transform_indices = @transform_1, window_bounds = array<i64: 8, 256>}, {pipeline_mode = #tpu.pipeline_mode<synchronous>, transform_indices = @transform_2, window_bounds = array<i64: 256, 512>}, {pipeline_mode = #tpu.pipeline_mode<synchronous>, transform_indices = @transform_3, window_bounds = array<i64: 1, 512>}, {pipeline_mode = #tpu.pipeline_mode<synchronous>, transform_indices = @transform_4, window_bounds = array<i64: 512, 128>}, {pipeline_mode = #tpu.pipeline_mode<synchronous>, transform_indices = @transform_5, window_bounds = array<i64: 1, 128>}, {pipeline_mode = #tpu.pipeline_mode<synchronous>, transform_indices = @transform_6, window_bounds = array<i64: 128, 512>}, {pipeline_mode = #tpu.pipeline_mode<synchronous>, transform_indices = @transform_7, window_bounds = array<i64: 1, 512>}, {pipeline_mode = #tpu.pipeline_mode<synchronous>, transform_indices = @transform_8, window_bounds = array<i64: 512, 256>}, {pipeline_mode = #tpu.pipeline_mode<synchronous>, transform_indices = @transform_9, window_bounds = array<i64: 1, 256>}, {pipeline_mode = #tpu.pipeline_mode<synchronous>, transform_indices = @transform_10, window_bounds = array<i64: 128, 128>}, {pipeline_mode = #tpu.pipeline_mode<synchronous>, transform_indices = @transform_11, window_bounds = array<i64: 1, 128>}, {transform_indices = @transform_12, window_bounds = array<i64: 8, 128>}, {transform_indices = @transform_13, window_bounds = array<i64: 1, 1, 1>}]} {
    %c0 = arith.constant 0 : index
    %c0_0 = arith.constant 0 : index
    %0 = vector.load %arg2[%c0, %c0_0] : memref<8x256xf32, #tpu.memory_space<vmem>>, vector<8x256xf32>
    %cst = arith.constant 0.000000e+00 : f32
    %1 = vector.broadcast %cst : f32 to vector<8x256xf32>
    %2 = arith.cmpf oeq, %0, %1 : vector<8x256xf32>
    %cst_1 = arith.constant 9.99999971E-10 : f32
    %3 = vector.broadcast %cst_1 : f32 to vector<8x256xf32>
    %4 = arith.select %2, %3, %0 : vector<8x256xi1>, vector<8x256xf32>
    %5 = arith.truncf %4 : vector<8x256xf32> to vector<8x256xbf16>
    %c0_2 = arith.constant 0 : index
    %c0_3 = arith.constant 0 : index
    %6 = vector.load %arg3[%c0_2, %c0_3] : memref<256x512xbf16, #tpu.memory_space<vmem>>, vector<256x512xbf16>
    %cst_4 = arith.constant dense<0.000000e+00> : vector<8x512xf32>
    %7 = tpu.matmul %5, %6, %cst_4 {dimension_numbers = #tpu.dot_dimension_numbers<[1], [0], [0], [1], [0, 0, 1, 1], [], []>} : vector<8x256xbf16>, vector<256x512xbf16>, vector<8x512xf32> -> vector<8x512xf32>
    %c0_5 = arith.constant 0 : index
    %c0_6 = arith.constant 0 : index
    %8 = vector.load %arg4[%c0_5, %c0_6] : memref<1x512xf32, #tpu.memory_space<vmem>>, vector<1x512xf32>
    %9 = vector.broadcast %8 : vector<1x512xf32> to vector<8x512xf32>
    %10 = arith.addf %7, %9 : vector<8x512xf32>
    %cst_7 = arith.constant 0.000000e+00 : f32
    %11 = vector.broadcast %cst_7 : f32 to vector<8x512xf32>
    %12 = arith.maximumf %10, %11 : vector<8x512xf32>
    %13 = arith.truncf %12 : vector<8x512xf32> to vector<8x512xbf16>
    %c0_8 = arith.constant 0 : index
    %c0_9 = arith.constant 0 : index
    %14 = vector.load %arg5[%c0_8, %c0_9] : memref<512x128xbf16, #tpu.memory_space<vmem>>, vector<512x128xbf16>
    %cst_10 = arith.constant dense<0.000000e+00> : vector<8x128xf32>
    %15 = tpu.matmul %13, %14, %cst_10 {dimension_numbers = #tpu.dot_dimension_numbers<[1], [0], [0], [1], [0, 0, 1, 1], [], []>} : vector<8x512xbf16>, vector<512x128xbf16>, vector<8x128xf32> -> vector<8x128xf32>
    %c0_11 = arith.constant 0 : index
    %c0_12 = arith.constant 0 : index
    %16 = vector.load %arg6[%c0_11, %c0_12] : memref<1x128xf32, #tpu.memory_space<vmem>>, vector<1x128xf32>
    %17 = vector.broadcast %16 : vector<1x128xf32> to vector<8x128xf32>
    %18 = arith.addf %15, %17 : vector<8x128xf32>
    %19 = arith.truncf %18 : vector<8x128xf32> to vector<8x128xbf16>
    %c0_13 = arith.constant 0 : index
    %c0_14 = arith.constant 0 : index
    %20 = vector.load %arg7[%c0_13, %c0_14] : memref<128x512xbf16, #tpu.memory_space<vmem>>, vector<128x512xbf16>
    %cst_15 = arith.constant dense<0.000000e+00> : vector<8x512xf32>
    %21 = tpu.matmul %19, %20, %cst_15 {dimension_numbers = #tpu.dot_dimension_numbers<[1], [0], [0], [1], [0, 0, 1, 1], [], []>} : vector<8x128xbf16>, vector<128x512xbf16>, vector<8x512xf32> -> vector<8x512xf32>
    %c0_16 = arith.constant 0 : index
    %c0_17 = arith.constant 0 : index
    %22 = vector.load %arg8[%c0_16, %c0_17] : memref<1x512xf32, #tpu.memory_space<vmem>>, vector<1x512xf32>
    %23 = vector.broadcast %22 : vector<1x512xf32> to vector<8x512xf32>
    %24 = arith.addf %21, %23 : vector<8x512xf32>
    %cst_18 = arith.constant 0.000000e+00 : f32
    %25 = vector.broadcast %cst_18 : f32 to vector<8x512xf32>
    %26 = arith.maximumf %24, %25 : vector<8x512xf32>
    %27 = arith.truncf %26 : vector<8x512xf32> to vector<8x512xbf16>
    %c0_19 = arith.constant 0 : index
    %c0_20 = arith.constant 0 : index
    %28 = vector.load %arg9[%c0_19, %c0_20] : memref<512x256xbf16, #tpu.memory_space<vmem>>, vector<512x256xbf16>
    %cst_21 = arith.constant dense<0.000000e+00> : vector<8x256xf32>
    %29 = tpu.matmul %27, %28, %cst_21 {dimension_numbers = #tpu.dot_dimension_numbers<[1], [0], [0], [1], [0, 0, 1, 1], [], []>} : vector<8x512xbf16>, vector<512x256xbf16>, vector<8x256xf32> -> vector<8x256xf32>
    %c0_22 = arith.constant 0 : index
    %c0_23 = arith.constant 0 : index
    %30 = vector.load %arg10[%c0_22, %c0_23] : memref<1x256xf32, #tpu.memory_space<vmem>>, vector<1x256xf32>
    %31 = vector.broadcast %30 : vector<1x256xf32> to vector<8x256xf32>
    %32 = arith.addf %29, %31 : vector<8x256xf32>
    %cst_24 = arith.constant 0.000000e+00 : f32
    %33 = vector.broadcast %cst_24 : f32 to vector<8x128xf32>
    %34 = arith.maximumf %18, %33 : vector<8x128xf32>
    %35 = arith.truncf %34 : vector<8x128xf32> to vector<8x128xbf16>
    %c0_25 = arith.constant 0 : index
    %c0_26 = arith.constant 0 : index
    %36 = vector.load %arg11[%c0_25, %c0_26] : memref<128x128xbf16, #tpu.memory_space<vmem>>, vector<128x128xbf16>
    %cst_27 = arith.constant dense<0.000000e+00> : vector<8x128xf32>
    %37 = tpu.matmul %35, %36, %cst_27 {dimension_numbers = #tpu.dot_dimension_numbers<[1], [0], [0], [1], [0, 0, 1, 1], [], []>} : vector<8x128xbf16>, vector<128x128xbf16>, vector<8x128xf32> -> vector<8x128xf32>
    %c0_28 = arith.constant 0 : index
    %c0_29 = arith.constant 0 : index
    %38 = vector.load %arg12[%c0_28, %c0_29] : memref<1x128xf32, #tpu.memory_space<vmem>>, vector<1x128xf32>
    %39 = vector.broadcast %38 : vector<1x128xf32> to vector<8x128xf32>
    %40 = arith.addf %37, %39 : vector<8x128xf32>
    %c0_30 = arith.constant 0 : index
    %c0_31 = arith.constant 0 : index
    %41 = vector.load %arg13[%c0_30, %c0_31] : memref<8x128xf32, #tpu.memory_space<vmem>>, vector<8x128xf32>
    tpu.vector_store %arg13[%c0_30, %c0_31], %40 {strides = array<i32>} : memref<8x128xf32, #tpu.memory_space<vmem>>, vector<8x128xf32>,
    %c8_i32 = arith.constant 8 : i32
    %42 = arith.muli %arg0, %c8_i32 : i32
    %43 = tpu.iota {dimensions = array<i32: 0>} : vector<8x1xi32>
    %44 = vector.broadcast %42 : i32 to vector<8x1xi32>
    %45 = arith.addi %44, %43 : vector<8x1xi32>
    %c2_i32 = arith.constant 2 : i32
    %46 = vector.broadcast %c2_i32 : i32 to vector<8x1xi32>
    %47 = arith.cmpi slt, %45, %46 : vector<8x1xi32>
    %48 = arith.extui %47 : vector<8x1xi1> to vector<8x1xi32>
    %49 = arith.sitofp %48 : vector<8x1xi32> to vector<8x1xf32>
    %50 = arith.subf %32, %4 : vector<8x256xf32>
    %c0_32 = arith.constant 0 : index
    %c0_33 = arith.constant 0 : index
    %51 = vector.load %arg1[%c0_32, %c0_33] : memref<1x256xf32, #tpu.memory_space<vmem>>, vector<1x256xf32>
    %52 = vector.broadcast %51 : vector<1x256xf32> to vector<8x256xf32>
    %53 = arith.mulf %50, %52 : vector<8x256xf32>
    %54 = vector.broadcast %49 : vector<8x1xf32> to vector<8x256xf32>
    %55 = arith.mulf %53, %54 : vector<8x256xf32>
    %56 = arith.mulf %55, %55 : vector<8x256xf32>
    %57 = vector.shape_cast %56 : vector<8x256xf32> to vector<1x8x256xf32>
    %cst_34 = arith.constant dense<0.000000e+00> : vector<1xf32>
    %58 = vector.multi_reduction <add>, %57, %cst_34 [1, 2] : vector<1x8x256xf32> to vector<1xf32>
    %59 = vector.shape_cast %58 : vector<1xf32> to vector<1x1x1xf32>
    %60 = vector.extract %59[0, 0, 0] : f32 from vector<1x1x1xf32>
    %61 = vector.broadcast %60 : f32 to vector<1x1x1xf32>
    %c0_35 = arith.constant 0 : index
    %c0_36 = arith.constant 0 : index
    %c0_37 = arith.constant 0 : index
    %62 = vector.load %arg14[%c0_35, %c0_36, %c0_37] : memref<1x1x1xf32, #tpu.memory_space<vmem>>, vector<1x1x1xf32>
    tpu.vector_store %arg14[%c0_35, %c0_36, %c0_37], %61 {strides = array<i32>} : memref<1x1x1xf32, #tpu.memory_space<vmem>>, vector<1x1x1xf32>,
    return
  }
  func.func @transform_0(%arg0: i32) -> (i32, i32) {
    %c0_i32 = arith.constant 0 : i32
    %c0_i32_0 = arith.constant 0 : i32
    %c0_i32_1 = arith.constant 0 : i32
    return %c0_i32, %c0_i32_0 : i32, i32
  }
  func.func @transform_1(%arg0: i32) -> (i32, i32) {
    %c0_i32 = arith.constant 0 : i32
    %c0_i32_0 = arith.constant 0 : i32
    return %arg0, %c0_i32 : i32, i32
  }
  func.func @transform_2(%arg0: i32) -> (i32, i32) {
    %c0_i32 = arith.constant 0 : i32
    %c0_i32_0 = arith.constant 0 : i32
    %c0_i32_1 = arith.constant 0 : i32
    return %c0_i32, %c0_i32_0 : i32, i32
  }
  func.func @transform_3(%arg0: i32) -> (i32, i32) {
    %c0_i32 = arith.constant 0 : i32
    %c0_i32_0 = arith.constant 0 : i32
    %c0_i32_1 = arith.constant 0 : i32
    return %c0_i32, %c0_i32_0 : i32, i32
  }
  func.func @transform_4(%arg0: i32) -> (i32, i32) {
    %c0_i32 = arith.constant 0 : i32
    %c0_i32_0 = arith.constant 0 : i32
    %c0_i32_1 = arith.constant 0 : i32
    return %c0_i32, %c0_i32_0 : i32, i32
  }
  func.func @transform_5(%arg0: i32) -> (i32, i32) {
    %c0_i32 = arith.constant 0 : i32
    %c0_i32_0 = arith.constant 0 : i32
    %c0_i32_1 = arith.constant 0 : i32
    return %c0_i32, %c0_i32_0 : i32, i32
  }
  func.func @transform_6(%arg0: i32) -> (i32, i32) {
    %c0_i32 = arith.constant 0 : i32
    %c0_i32_0 = arith.constant 0 : i32
    %c0_i32_1 = arith.constant 0 : i32
    return %c0_i32, %c0_i32_0 : i32, i32
  }
  func.func @transform_7(%arg0: i32) -> (i32, i32) {
    %c0_i32 = arith.constant 0 : i32
    %c0_i32_0 = arith.constant 0 : i32
    %c0_i32_1 = arith.constant 0 : i32
    return %c0_i32, %c0_i32_0 : i32, i32
  }
  func.func @transform_8(%arg0: i32) -> (i32, i32) {
    %c0_i32 = arith.constant 0 : i32
    %c0_i32_0 = arith.constant 0 : i32
    %c0_i32_1 = arith.constant 0 : i32
    return %c0_i32, %c0_i32_0 : i32, i32
  }
  func.func @transform_9(%arg0: i32) -> (i32, i32) {
    %c0_i32 = arith.constant 0 : i32
    %c0_i32_0 = arith.constant 0 : i32
    %c0_i32_1 = arith.constant 0 : i32
    return %c0_i32, %c0_i32_0 : i32, i32
  }
  func.func @transform_10(%arg0: i32) -> (i32, i32) {
    %c0_i32 = arith.constant 0 : i32
    %c0_i32_0 = arith.constant 0 : i32
    %c0_i32_1 = arith.constant 0 : i32
    return %c0_i32, %c0_i32_0 : i32, i32
  }
  func.func @transform_11(%arg0: i32) -> (i32, i32) {
    %c0_i32 = arith.constant 0 : i32
    %c0_i32_0 = arith.constant 0 : i32
    %c0_i32_1 = arith.constant 0 : i32
    return %c0_i32, %c0_i32_0 : i32, i32
  }
  func.func @transform_12(%arg0: i32) -> (i32, i32) {
    %c0_i32 = arith.constant 0 : i32
    %c0_i32_0 = arith.constant 0 : i32
    return %arg0, %c0_i32 : i32, i32
  }
  func.func @transform_13(%arg0: i32) -> (i32, i32, i32) {
    %c0_i32 = arith.constant 0 : i32
    %c0_i32_0 = arith.constant 0 : i32
    %c0_i32_1 = arith.constant 0 : i32
    return %arg0, %c0_i32, %c0_i32_0 : i32, i32, i32
  }
}

</mosaic_0001>

<llo_original>
// kernel: tpu_custom_call.1
$region0: #{tpu_custom_call.1}
  #allocation0 [shape = 'u32[]', space=smem, size = 0x4, offset = 0x4, fixed_abs, tag = 'smem constant byte address 0x4 - core index']
  #allocation1 [shape = 'u32[72,128]{1,0:T(1,128)}', space=vmem, size = 0x9000, scoped, tag = 'internal scratch']
  %s0 = inlined_call_operand.hbm [shape: f32[1,256], index: 0, kind: input, shape index: {}]
  %s1 = inlined_call_operand.hbm [shape: f32[8,256], index: 1, kind: input, shape index: {}]
  %s2 = inlined_call_operand.hbm [shape: bf16[256,512], index: 2, kind: input, shape index: {}]
  %s3 = inlined_call_operand.hbm [shape: f32[1,512], index: 3, kind: input, shape index: {}]
  %s4 = inlined_call_operand.hbm [shape: bf16[512,128], index: 4, kind: input, shape index: {}]
  %s5 = inlined_call_operand.hbm [shape: f32[1,128], index: 5, kind: input, shape index: {}]
  %s6 = inlined_call_operand.hbm [shape: bf16[128,512], index: 6, kind: input, shape index: {}]
  %s7 = inlined_call_operand.vmem [shape: f32[1,512], index: 7, kind: input, shape index: {}]
  %s8 = inlined_call_operand.hbm [shape: bf16[512,256], index: 8, kind: input, shape index: {}]
  %s9 = inlined_call_operand.vmem [shape: f32[1,256], index: 9, kind: input, shape index: {}]
  %s10 = inlined_call_operand.hbm [shape: bf16[128,128], index: 10, kind: input, shape index: {}]
  %s11 = inlined_call_operand.vmem [shape: f32[1,128], index: 11, kind: input, shape index: {}]
  %s12 = inlined_call_operand.hbm [shape: f32[8,128], index: 12, kind: output, shape index: {0}]
  %s13 = inlined_call_operand.hbm [shape: f32[1,1,1], index: 13, kind: output, shape index: {1}]
  %14 = xla_tuple %s12, %s13
  %s15 = sld [smem:[#allocation0]]
  $region102: #{tpu_custom_call.1} parent=0
    _
  %s17 = ssub.s32 1, %s15
  %s18 = scalar_select 0, %s17, %s15
  $region1: #{tpu_custom_call.1} parent=0
    #allocation2 [shape = 'u8[1024]{0}', space=vmem, size = 0x400, scoped, tag = 'input window, operand 0, single buffered']
    #allocation3 [shape = 's32[1]{0}', space=sflag, size = 0x4, scoped, tag = 'scoped memory for tpu_custom_call.1']
    #allocation4 [shape = 's32[1]{0}', space=sflag, size = 0x4, scoped, tag = 'scoped memory for tpu_custom_call.1']
    #allocation5 [shape = 'u8[8192]{0}', space=vmem, size = 0x2000, scoped, tag = 'input window, operand 1, single buffered']
    #allocation6 [shape = 's32[1]{0}', space=sflag, size = 0x4, scoped, tag = 'scoped memory for tpu_custom_call.1']
    #allocation7 [shape = 'u8[262144]{0}', space=vmem, size = 0x40000, scoped, tag = 'input window, operand 2, single buffered']
    #allocation8 [shape = 'u8[2048]{0}', space=vmem, size = 0x800, scoped, tag = 'input window, operand 3, single buffered']
    #allocation9 [shape = 's32[1]{0}', space=sflag, size = 0x4, scoped, tag = 'scoped memory for tpu_custom_call.1']
    #allocation10 [shape = 'u8[131072]{0}', space=vmem, size = 0x20000, scoped, tag = 'input window, operand 4, single buffered']
    #allocation11 [shape = 'u8[512]{0}', space=vmem, size = 0x400, scoped, tag = 'input window, operand 5, single buffered']
    #allocation12 [shape = 's32[1]{0}', space=sflag, size = 0x4, scoped, tag = 'scoped memory for tpu_custom_call.1']
    #allocation13 [shape = 'u8[131072]{0}', space=vmem, size = 0x20000, scoped, tag = 'input window, operand 6, single buffered']
    #allocation14 [shape = 'u8[262144]{0}', space=vmem, size = 0x40000, scoped, tag = 'input window, operand 8, single buffered']
    #allocation15 [shape = 's32[1]{0}', space=sflag, size = 0x4, scoped, tag = 'scoped memory for tpu_custom_call.1']
    #allocation16 [shape = 'u8[32768]{0}', space=vmem, size = 0x8000, scoped, tag = 'input window, operand 10, single buffered']
    #allocation17 [shape = 'u8[4096]{0}', space=vmem, size = 0x1000, scoped, tag = 'output window, operand 0, single buffered']
    #allocation18 [shape = 'u8[512]{0}', space=vmem, size = 0x400, scoped, tag = 'output window, operand 1, single buffered']
    #allocation19 [shape = 's32[1]{0}', space=sflag, size = 0x4, scoped, tag = 'scoped memory for tpu_custom_call.1']
    %19 = vsyncpa [#allocation3], 0
    %20 = vsyncpa [#allocation6], 0
    %21 = vsyncpa [#allocation9], 0
    %22 = vsyncpa [#allocation12], 0
    %23 = vsyncpa [#allocation15], 0
    %24 = vsyncpa [#allocation4], 0
    %25 = vsyncpa [#allocation19], 0
    // Predicated region
    $region2: #{tpu_custom_call.1} parent=1 // pred_check
      _
    $region3: #{tpu_custom_call.1} parent=1 // pred_check_branch
      %27 = sbr.rel (0) target = $region5
    $region4: #{tpu_custom_call.1} parent=1 // pred_region
      %29 = vsyncadd [#allocation3], 0
      %s31 = sshll.u32 %s0, 4
      %s32 = int_to_ptr.hbm [resolvable:$true] %s31
      %s33 = sshll.u32 [#allocation2], 4
      %s34 = int_to_ptr.vmem [resolvable:$true] %s33
      %36 = dma.hbm_to_vmem [thread:$0]  %s32, 32, %s34, [#allocation3]
    $region5: #{tpu_custom_call.1} parent=1 // pred_fallthru
      _
    // Predicated region
    $region6: #{tpu_custom_call.1} parent=1 // pred_check
      _
    $region7: #{tpu_custom_call.1} parent=1 // pred_check_branch
      %38 = sbr.rel (0) target = $region9
    $region8: #{tpu_custom_call.1} parent=1 // pred_region
      %40 = vsyncadd [#allocation6], 0
      %s42 = sshll.u32 %s1, 4
      %s43 = int_to_ptr.hbm [resolvable:$true] %s42
      %s44 = sshll.u32 [#allocation5], 4
      %s45 = int_to_ptr.vmem [resolvable:$true] %s44
      %47 = dma.hbm_to_vmem [thread:$0]  %s43, 256, %s45, [#allocation6]
    $region9: #{tpu_custom_call.1} parent=1 // pred_fallthru
      _
    // Predicated region
    $region10: #{tpu_custom_call.1} parent=1 // pred_check
      _
    $region11: #{tpu_custom_call.1} parent=1 // pred_check_branch
      %49 = sbr.rel (0) target = $region13
    $region12: #{tpu_custom_call.1} parent=1 // pred_region
      %51 = vsyncadd [#allocation6], 0
      %s52 = sshll.u32 %s2, 4
      %s53 = int_to_ptr.hbm [resolvable:$true] %s52
      %s54 = sshll.u32 [#allocation7], 4
      %s55 = int_to_ptr.vmem [resolvable:$true] %s54
      %60 = dma.hbm_to_vmem [thread:$0]  %s53, 8192, %s55, [#allocation6], 256, 256, 16
    $region13: #{tpu_custom_call.1} parent=1 // pred_fallthru
      _
    // Predicated region
    $region14: #{tpu_custom_call.1} parent=1 // pred_check
      _
    $region15: #{tpu_custom_call.1} parent=1 // pred_check_branch
      %62 = sbr.rel (0) target = $region17
    $region16: #{tpu_custom_call.1} parent=1 // pred_region
      %64 = vsyncadd [#allocation9], 0
      %s66 = sshll.u32 %s3, 4
      %s67 = int_to_ptr.hbm [resolvable:$true] %s66
      %s68 = sshll.u32 [#allocation8], 4
      %s69 = int_to_ptr.vmem [resolvable:$true] %s68
      %71 = dma.hbm_to_vmem [thread:$0]  %s67, 64, %s69, [#allocation9]
    $region17: #{tpu_custom_call.1} parent=1 // pred_fallthru
      _
    // Predicated region
    $region18: #{tpu_custom_call.1} parent=1 // pred_check
      _
    $region19: #{tpu_custom_call.1} parent=1 // pred_check_branch
      %73 = sbr.rel (0) target = $region21
    $region20: #{tpu_custom_call.1} parent=1 // pred_region
      %75 = vsyncadd [#allocation9], 0
      %s76 = sshll.u32 %s4, 4
      %s77 = int_to_ptr.hbm [resolvable:$true] %s76
      %s78 = sshll.u32 [#allocation10], 4
      %s79 = int_to_ptr.vmem [resolvable:$true] %s78
      %84 = dma.hbm_to_vmem [thread:$0]  %s77, 4096, %s79, [#allocation9], 64, 64, 4
    $region21: #{tpu_custom_call.1} parent=1 // pred_fallthru
      _
    // Predicated region
    $region22: #{tpu_custom_call.1} parent=1 // pred_check
      _
    $region23: #{tpu_custom_call.1} parent=1 // pred_check_branch
      %86 = sbr.rel (0) target = $region25
    $region24: #{tpu_custom_call.1} parent=1 // pred_region
      %88 = vsyncadd [#allocation12], 0
      %s90 = sshll.u32 %s5, 4
      %s91 = int_to_ptr.hbm [resolvable:$true] %s90
      %s92 = sshll.u32 [#allocation11], 4
      %s93 = int_to_ptr.vmem [resolvable:$true] %s92
      %95 = dma.hbm_to_vmem [thread:$0]  %s91, 16, %s93, [#allocation12]
    $region25: #{tpu_custom_call.1} parent=1 // pred_fallthru
      _
    // Predicated region
    $region26: #{tpu_custom_call.1} parent=1 // pred_check
      _
    $region27: #{tpu_custom_call.1} parent=1 // pred_check_branch
      %97 = sbr.rel (0) target = $region29
    $region28: #{tpu_custom_call.1} parent=1 // pred_region
      %99 = vsyncadd [#allocation12], 0
      %s100 = sshll.u32 %s6, 4
      %s101 = int_to_ptr.hbm [resolvable:$true] %s100
      %s102 = sshll.u32 [#allocation13], 4
      %s103 = int_to_ptr.vmem [resolvable:$true] %s102
      %108 = dma.hbm_to_vmem [thread:$0]  %s101, 4096, %s103, [#allocation12], 256, 256, 16
    $region29: #{tpu_custom_call.1} parent=1 // pred_fallthru
      _
    // Predicated region
    $region30: #{tpu_custom_call.1} parent=1 // pred_check
      _
    $region31: #{tpu_custom_call.1} parent=1 // pred_check_branch
      %110 = sbr.rel (0) target = $region33
    $region32: #{tpu_custom_call.1} parent=1 // pred_region
      _
    $region33: #{tpu_custom_call.1} parent=1 // pred_fallthru
      _
    // Predicated region
    $region34: #{tpu_custom_call.1} parent=1 // pred_check
      _
    $region35: #{tpu_custom_call.1} parent=1 // pred_check_branch
      %112 = sbr.rel (0) target = $region37
    $region36: #{tpu_custom_call.1} parent=1 // pred_region
      %114 = vsyncadd [#allocation15], 0
      %s115 = sshll.u32 %s8, 4
      %s116 = int_to_ptr.hbm [resolvable:$true] %s115
      %s117 = sshll.u32 [#allocation14], 4
      %s118 = int_to_ptr.vmem [resolvable:$true] %s117
      %123 = dma.hbm_to_vmem [thread:$0]  %s116, 8192, %s118, [#allocation15], 128, 128, 8
    $region37: #{tpu_custom_call.1} parent=1 // pred_fallthru
      _
    // Predicated region
    $region38: #{tpu_custom_call.1} parent=1 // pred_check
      _
    $region39: #{tpu_custom_call.1} parent=1 // pred_check_branch
      %125 = sbr.rel (0) target = $region41
    $region40: #{tpu_custom_call.1} parent=1 // pred_region
      _
    $region41: #{tpu_custom_call.1} parent=1 // pred_fallthru
      _
    // Predicated region
    $region42: #{tpu_custom_call.1} parent=1 // pred_check
      _
    $region43: #{tpu_custom_call.1} parent=1 // pred_check_branch
      %127 = sbr.rel (0) target = $region45
    $region44: #{tpu_custom_call.1} parent=1 // pred_region
      %129 = vsyncadd [#allocation15], 0
      %s130 = sshll.u32 %s10, 4
      %s131 = int_to_ptr.hbm [resolvable:$true] %s130
      %s132 = sshll.u32 [#allocation16], 4
      %s133 = int_to_ptr.vmem [resolvable:$true] %s132
      %138 = dma.hbm_to_vmem [thread:$0]  %s131, 1024, %s133, [#allocation15], 64, 64, 4
    $region45: #{tpu_custom_call.1} parent=1 // pred_fallthru
      _
    // Predicated region
    $region46: #{tpu_custom_call.1} parent=1 // pred_check
      _
    $region47: #{tpu_custom_call.1} parent=1 // pred_check_branch
      %140 = sbr.rel (0) target = $region49
    $region48: #{tpu_custom_call.1} parent=1 // pred_region
      _
    $region49: #{tpu_custom_call.1} parent=1 // pred_fallthru
      _
    // Predicated region
    $region50: #{tpu_custom_call.1} parent=1 // pred_check
      _
    $region51: #{tpu_custom_call.1} parent=1 // pred_check_branch
      %142 = sbr.rel (0) target = $region53
    $region52: #{tpu_custom_call.1} parent=1 // pred_region
      %144 = dma.done [#allocation3], 32
    $region53: #{tpu_custom_call.1} parent=1 // pred_fallthru
      _
    // Predicated region
    $region54: #{tpu_custom_call.1} parent=1 // pred_check
      _
    $region55: #{tpu_custom_call.1} parent=1 // pred_check_branch
      %146 = sbr.rel (0) target = $region57
    $region56: #{tpu_custom_call.1} parent=1 // pred_region
      %148 = dma.done [#allocation6], 256
    $region57: #{tpu_custom_call.1} parent=1 // pred_fallthru
      _
    // Predicated region
    $region58: #{tpu_custom_call.1} parent=1 // pred_check
      _
    $region59: #{tpu_custom_call.1} parent=1 // pred_check_branch
      %150 = sbr.rel (0) target = $region61
    $region60: #{tpu_custom_call.1} parent=1 // pred_region
      %152 = dma.done [#allocation6], 8192
    $region61: #{tpu_custom_call.1} parent=1 // pred_fallthru
      _
    // Predicated region
    $region62: #{tpu_custom_call.1} parent=1 // pred_check
      _
    $region63: #{tpu_custom_call.1} parent=1 // pred_check_branch
      %154 = sbr.rel (0) target = $region65
    $region64: #{tpu_custom_call.1} parent=1 // pred_region
      %156 = dma.done [#allocation9], 64
    $region65: #{tpu_custom_call.1} parent=1 // pred_fallthru
      _
    // Predicated region
    $region66: #{tpu_custom_call.1} parent=1 // pred_check
      _
    $region67: #{tpu_custom_call.1} parent=1 // pred_check_branch
      %158 = sbr.rel (0) target = $region69
    $region68: #{tpu_custom_call.1} parent=1 // pred_region
      %160 = dma.done [#allocation9], 4096
    $region69: #{tpu_custom_call.1} parent=1 // pred_fallthru
      _
    // Predicated region
    $region70: #{tpu_custom_call.1} parent=1 // pred_check
      _
    $region71: #{tpu_custom_call.1} parent=1 // pred_check_branch
      %162 = sbr.rel (0) target = $region73
    $region72: #{tpu_custom_call.1} parent=1 // pred_region
      %164 = dma.done [#allocation12], 16
    $region73: #{tpu_custom_call.1} parent=1 // pred_fallthru
      _
    // Predicated region
    $region74: #{tpu_custom_call.1} parent=1 // pred_check
      _
    $region75: #{tpu_custom_call.1} parent=1 // pred_check_branch
      %166 = sbr.rel (0) target = $region77
    $region76: #{tpu_custom_call.1} parent=1 // pred_region
      %168 = dma.done [#allocation12], 4096
    $region77: #{tpu_custom_call.1} parent=1 // pred_fallthru
      _
    // Predicated region
    $region78: #{tpu_custom_call.1} parent=1 // pred_check
      _
    $region79: #{tpu_custom_call.1} parent=1 // pred_check_branch
      %170 = sbr.rel (0) target = $region81
    $region80: #{tpu_custom_call.1} parent=1 // pred_region
      %172 = dma.done [#allocation15], 8192
    $region81: #{tpu_custom_call.1} parent=1 // pred_fallthru
      _
    // Predicated region
    $region82: #{tpu_custom_call.1} parent=1 // pred_check
      _
    $region83: #{tpu_custom_call.1} parent=1 // pred_check_branch
      %174 = sbr.rel (0) target = $region85
    $region84: #{tpu_custom_call.1} parent=1 // pred_region
      %176 = dma.done [#allocation15], 1024
    $region85: #{tpu_custom_call.1} parent=1 // pred_fallthru
      _
    %v177 = vld [vmem:[#allocation5] sm:$0xff]
    %v178 = vld [vmem:[#allocation5 + $0x8] sm:$0xff]
    %vm179 = vcmp.eq.f32.partialorder %v177, 0.0
    %vm180 = vcmp.eq.f32.partialorder %v178, 0.0
    %v181 = vsel %vm179, 1e-09, %v177
    %v182 = vsel %vm180, 1e-09, %v178
    %v183 = vpack.c.bf16 %v181, %v181
    %v184 = vpack.c.bf16 %v182, %v182
    %v185 = vld [vmem:[#allocation7] sm:$0xff]
    %v186 = vld [vmem:[#allocation7 + $0x8] sm:$0xff]
    %v187 = vld [vmem:[#allocation7 + $0x10] sm:$0xff]
    %v188 = vld [vmem:[#allocation7 + $0x18] sm:$0xff]
    %v189 = vld [vmem:[#allocation7 + $0x20] sm:$0xff]
    %v190 = vld [vmem:[#allocation7 + $0x28] sm:$0xff]
    %v191 = vld [vmem:[#allocation7 + $0x30] sm:$0xff]
    %v192 = vld [vmem:[#allocation7 + $0x38] sm:$0xff]
    %v193 = vld [vmem:[#allocation7 + $0x40] sm:$0xff]
    %v194 = vld [vmem:[#allocation7 + $0x48] sm:$0xff]
    %v195 = vld [vmem:[#allocation7 + $0x50] sm:$0xff]
    %v196 = vld [vmem:[#allocation7 + $0x58] sm:$0xff]
    %v197 = vld [vmem:[#allocation7 + $0x60] sm:$0xff]
    %v198 = vld [vmem:[#allocation7 + $0x68] sm:$0xff]
    %v199 = vld [vmem:[#allocation7 + $0x70] sm:$0xff]
    %v200 = vld [vmem:[#allocation7 + $0x78] sm:$0xff]
    %v201 = vld [vmem:[#allocation7 + $0x80] sm:$0xff]
    %v202 = vld [vmem:[#allocation7 + $0x88] sm:$0xff]
    %v203 = vld [vmem:[#allocation7 + $0x90] sm:$0xff]
    %v204 = vld [vmem:[#allocation7 + $0x98] sm:$0xff]
    %v205 = vld [vmem:[#allocation7 + $0xa0] sm:$0xff]
    %v206 = vld [vmem:[#allocation7 + $0xa8] sm:$0xff]
    %v207 = vld [vmem:[#allocation7 + $0xb0] sm:$0xff]
    %v208 = vld [vmem:[#allocation7 + $0xb8] sm:$0xff]
    %v209 = vld [vmem:[#allocation7 + $0xc0] sm:$0xff]
    %v210 = vld [vmem:[#allocation7 + $0xc8] sm:$0xff]
    %v211 = vld [vmem:[#allocation7 + $0xd0] sm:$0xff]
    %v212 = vld [vmem:[#allocation7 + $0xd8] sm:$0xff]
    %v213 = vld [vmem:[#allocation7 + $0xe0] sm:$0xff]
    %v214 = vld [vmem:[#allocation7 + $0xe8] sm:$0xff]
    %v215 = vld [vmem:[#allocation7 + $0xf0] sm:$0xff]
    %v216 = vld [vmem:[#allocation7 + $0xf8] sm:$0xff]
    %v217 = vld [vmem:[#allocation7 + $0x100] sm:$0xff]
    %v218 = vld [vmem:[#allocation7 + $0x108] sm:$0xff]
    %v219 = vld [vmem:[#allocation7 + $0x110] sm:$0xff]
    %v220 = vld [vmem:[#allocation7 + $0x118] sm:$0xff]
    %v221 = vld [vmem:[#allocation7 + $0x120] sm:$0xff]
    %v222 = vld [vmem:[#allocation7 + $0x128] sm:$0xff]
    %v223 = vld [vmem:[#allocation7 + $0x130] sm:$0xff]
    %v224 = vld [vmem:[#allocation7 + $0x138] sm:$0xff]
    %v225 = vld [vmem:[#allocation7 + $0x140] sm:$0xff]
    %v226 = vld [vmem:[#allocation7 + $0x148] sm:$0xff]
    %v227 = vld [vmem:[#allocation7 + $0x150] sm:$0xff]
    %v228 = vld [vmem:[#allocation7 + $0x158] sm:$0xff]
    %v229 = vld [vmem:[#allocation7 + $0x160] sm:$0xff]
    %v230 = vld [vmem:[#allocation7 + $0x168] sm:$0xff]
    %v231 = vld [vmem:[#allocation7 + $0x170] sm:$0xff]
    %v232 = vld [vmem:[#allocation7 + $0x178] sm:$0xff]
    %v233 = vld [vmem:[#allocation7 + $0x180] sm:$0xff]
    %v234 = vld [vmem:[#allocation7 + $0x188] sm:$0xff]
    %v235 = vld [vmem:[#allocation7 + $0x190] sm:$0xff]
    %v236 = vld [vmem:[#allocation7 + $0x198] sm:$0xff]
    %v237 = vld [vmem:[#allocation7 + $0x1a0] sm:$0xff]
    %v238 = vld [vmem:[#allocation7 + $0x1a8] sm:$0xff]
    %v239 = vld [vmem:[#allocation7 + $0x1b0] sm:$0xff]
    %v240 = vld [vmem:[#allocation7 + $0x1b8] sm:$0xff]
    %v241 = vld [vmem:[#allocation7 + $0x1c0] sm:$0xff]
    %v242 = vld [vmem:[#allocation7 + $0x1c8] sm:$0xff]
    %v243 = vld [vmem:[#allocation7 + $0x1d0] sm:$0xff]
    %v244 = vld [vmem:[#allocation7 + $0x1d8] sm:$0xff]
    %v245 = vld [vmem:[#allocation7 + $0x1e0] sm:$0xff]
    %v246 = vld [vmem:[#allocation7 + $0x1e8] sm:$0xff]
    %v247 = vld [vmem:[#allocation7 + $0x1f0] sm:$0xff]
    %v248 = vld [vmem:[#allocation7 + $0x1f8] sm:$0xff]
    %v249 = vld [vmem:[#allocation8] sm:$0xf]
    %v251 = vperm.slane %v249, 0
    %v252 = vperm.slane %v249, 1
    %v253 = vperm.slane %v249, 2
    %v254 = vperm.slane %v249, 3
    %v323 = vunpack.c.l.b16 %v185
    %v324 = vunpack.c.h.b16 %v185
    %v325 = vunpack.c.l.b16 %v186
    %v326 = vunpack.c.h.b16 %v186
    %v327 = vunpack.c.l.b16 %v187
    %v328 = vunpack.c.h.b16 %v187
    %v329 = vunpack.c.l.b16 %v188
    %v330 = vunpack.c.h.b16 %v188
    %v331 = vunpack.c.l.b16 %v189
    %v332 = vunpack.c.h.b16 %v189
    %v333 = vunpack.c.l.b16 %v190
    %v334 = vunpack.c.h.b16 %v190
    %v335 = vunpack.c.l.b16 %v191
    %v336 = vunpack.c.h.b16 %v191
    %v337 = vunpack.c.l.b16 %v192
    %v338 = vunpack.c.h.b16 %v192
    %v339 = vunpack.c.l.b16 %v193
    %v340 = vunpack.c.h.b16 %v193
    %v341 = vunpack.c.l.b16 %v194
    %v342 = vunpack.c.h.b16 %v194
    %v343 = vunpack.c.l.b16 %v195
    %v344 = vunpack.c.h.b16 %v195
    %v345 = vunpack.c.l.b16 %v196
    %v346 = vunpack.c.h.b16 %v196
    %v347 = vunpack.c.l.b16 %v197
    %v348 = vunpack.c.h.b16 %v197
    %v349 = vunpack.c.l.b16 %v198
    %v350 = vunpack.c.h.b16 %v198
    %v351 = vunpack.c.l.b16 %v199
    %v352 = vunpack.c.h.b16 %v199
    %v353 = vunpack.c.l.b16 %v200
    %v354 = vunpack.c.h.b16 %v200
    %v355 = vunpack.c.l.b16 %v201
    %v356 = vunpack.c.h.b16 %v201
    %v357 = vunpack.c.l.b16 %v202
    %v358 = vunpack.c.h.b16 %v202
    %v359 = vunpack.c.l.b16 %v203
    %v360 = vunpack.c.h.b16 %v203
    %v361 = vunpack.c.l.b16 %v204
    %v362 = vunpack.c.h.b16 %v204
    %v363 = vunpack.c.l.b16 %v205
    %v364 = vunpack.c.h.b16 %v205
    %v365 = vunpack.c.l.b16 %v206
    %v366 = vunpack.c.h.b16 %v206
    %v367 = vunpack.c.l.b16 %v207
    %v368 = vunpack.c.h.b16 %v207
    %v369 = vunpack.c.l.b16 %v208
    %v370 = vunpack.c.h.b16 %v208
    %v371 = vunpack.c.l.b16 %v209
    %v372 = vunpack.c.h.b16 %v209
    %v373 = vunpack.c.l.b16 %v210
    %v374 = vunpack.c.h.b16 %v210
    %v375 = vunpack.c.l.b16 %v211
    %v376 = vunpack.c.h.b16 %v211
    %v377 = vunpack.c.l.b16 %v212
    %v378 = vunpack.c.h.b16 %v212
    %v379 = vunpack.c.l.b16 %v213
    %v380 = vunpack.c.h.b16 %v213
    %v381 = vunpack.c.l.b16 %v214
    %v382 = vunpack.c.h.b16 %v214
    %v383 = vunpack.c.l.b16 %v215
    %v384 = vunpack.c.h.b16 %v215
    %v385 = vunpack.c.l.b16 %v216
    %v386 = vunpack.c.h.b16 %v216
    %v387 = vunpack.c.l.b16 %v217
    %v388 = vunpack.c.h.b16 %v217
    %v389 = vunpack.c.l.b16 %v218
    %v390 = vunpack.c.h.b16 %v218
    %v391 = vunpack.c.l.b16 %v219
    %v392 = vunpack.c.h.b16 %v219
    %v393 = vunpack.c.l.b16 %v220
    %v394 = vunpack.c.h.b16 %v220
    %v395 = vunpack.c.l.b16 %v221
    %v396 = vunpack.c.h.b16 %v221
    %v397 = vunpack.c.l.b16 %v222
    %v398 = vunpack.c.h.b16 %v222
    %v399 = vunpack.c.l.b16 %v223
    %v400 = vunpack.c.h.b16 %v223
    %v401 = vunpack.c.l.b16 %v224
    %v402 = vunpack.c.h.b16 %v224
    %v403 = vunpack.c.l.b16 %v225
    %v404 = vunpack.c.h.b16 %v225
    %v405 = vunpack.c.l.b16 %v226
    %v406 = vunpack.c.h.b16 %v226
    %v407 = vunpack.c.l.b16 %v227
    %v408 = vunpack.c.h.b16 %v227
    %v409 = vunpack.c.l.b16 %v228
    %v410 = vunpack.c.h.b16 %v228
    %v411 = vunpack.c.l.b16 %v229
    %v412 = vunpack.c.h.b16 %v229
    %v413 = vunpack.c.l.b16 %v230
    %v414 = vunpack.c.h.b16 %v230
    %v415 = vunpack.c.l.b16 %v231
    %v416 = vunpack.c.h.b16 %v231
    %v417 = vunpack.c.l.b16 %v232
    %v418 = vunpack.c.h.b16 %v232
    %v419 = vunpack.c.l.b16 %v233
    %v420 = vunpack.c.h.b16 %v233
    %v421 = vunpack.c.l.b16 %v234
    %v422 = vunpack.c.h.b16 %v234
    %v423 = vunpack.c.l.b16 %v235
    %v424 = vunpack.c.h.b16 %v235
    %v425 = vunpack.c.l.b16 %v236
    %v426 = vunpack.c.h.b16 %v236
    %v427 = vunpack.c.l.b16 %v237
    %v428 = vunpack.c.h.b16 %v237
    %v429 = vunpack.c.l.b16 %v238
    %v430 = vunpack.c.h.b16 %v238
    %v431 = vunpack.c.l.b16 %v239
    %v432 = vunpack.c.h.b16 %v239
    %v433 = vunpack.c.l.b16 %v240
    %v434 = vunpack.c.h.b16 %v240
    %v435 = vunpack.c.l.b16 %v241
    %v436 = vunpack.c.h.b16 %v241
    %v437 = vunpack.c.l.b16 %v242
    %v438 = vunpack.c.h.b16 %v242
    %v439 = vunpack.c.l.b16 %v243
    %v440 = vunpack.c.h.b16 %v243
    %v441 = vunpack.c.l.b16 %v244
    %v442 = vunpack.c.h.b16 %v244
    %v443 = vunpack.c.l.b16 %v245
    %v444 = vunpack.c.h.b16 %v245
    %v445 = vunpack.c.l.b16 %v246
    %v446 = vunpack.c.h.b16 %v246
    %v447 = vunpack.c.l.b16 %v247
    %v448 = vunpack.c.h.b16 %v247
    %v449 = vunpack.c.l.b16 %v248
    %v450 = vunpack.c.h.b16 %v248
    %v451 = vpack.c.b16 %v327, %v323
    %v452 = vpack.c.b16 %v328, %v324
    %v453 = vpack.c.b16 %v329, %v325
    %v454 = vpack.c.b16 %v330, %v326
    %v455 = vpack.c.b16 %v335, %v331
    %v456 = vpack.c.b16 %v336, %v332
    %v457 = vpack.c.b16 %v337, %v333
    %v458 = vpack.c.b16 %v338, %v334
    %v459 = vpack.c.b16 %v343, %v339
    %v460 = vpack.c.b16 %v344, %v340
    %v461 = vpack.c.b16 %v345, %v341
    %v462 = vpack.c.b16 %v346, %v342
    %v463 = vpack.c.b16 %v351, %v347
    %v464 = vpack.c.b16 %v352, %v348
    %v465 = vpack.c.b16 %v353, %v349
    %v466 = vpack.c.b16 %v354, %v350
    %v467 = vpack.c.b16 %v359, %v355
    %v468 = vpack.c.b16 %v360, %v356
    %v469 = vpack.c.b16 %v361, %v357
    %v470 = vpack.c.b16 %v362, %v358
    %v471 = vpack.c.b16 %v367, %v363
    %v472 = vpack.c.b16 %v368, %v364
    %v473 = vpack.c.b16 %v369, %v365
    %v474 = vpack.c.b16 %v370, %v366
    %v475 = vpack.c.b16 %v375, %v371
    %v476 = vpack.c.b16 %v376, %v372
    %v477 = vpack.c.b16 %v377, %v373
    %v478 = vpack.c.b16 %v378, %v374
    %v479 = vpack.c.b16 %v383, %v379
    %v480 = vpack.c.b16 %v384, %v380
    %v481 = vpack.c.b16 %v385, %v381
    %v482 = vpack.c.b16 %v386, %v382
    %v483 = vpack.c.b16 %v391, %v387
    %v484 = vpack.c.b16 %v392, %v388
    %v485 = vpack.c.b16 %v393, %v389
    %v486 = vpack.c.b16 %v394, %v390
    %v487 = vpack.c.b16 %v399, %v395
    %v488 = vpack.c.b16 %v400, %v396
    %v489 = vpack.c.b16 %v401, %v397
    %v490 = vpack.c.b16 %v402, %v398
    %v491 = vpack.c.b16 %v407, %v403
    %v492 = vpack.c.b16 %v408, %v404
    %v493 = vpack.c.b16 %v409, %v405
    %v494 = vpack.c.b16 %v410, %v406
    %v495 = vpack.c.b16 %v415, %v411
    %v496 = vpack.c.b16 %v416, %v412
    %v497 = vpack.c.b16 %v417, %v413
    %v498 = vpack.c.b16 %v418, %v414
    %v499 = vpack.c.b16 %v423, %v419
    %v500 = vpack.c.b16 %v424, %v420
    %v501 = vpack.c.b16 %v425, %v421
    %v502 = vpack.c.b16 %v426, %v422
    %v503 = vpack.c.b16 %v431, %v427
    %v504 = vpack.c.b16 %v432, %v428
    %v505 = vpack.c.b16 %v433, %v429
    %v506 = vpack.c.b16 %v434, %v430
    %v507 = vpack.c.b16 %v439, %v435
    %v508 = vpack.c.b16 %v440, %v436
    %v509 = vpack.c.b16 %v441, %v437
    %v510 = vpack.c.b16 %v442, %v438
    %v511 = vpack.c.b16 %v447, %v443
    %v512 = vpack.c.b16 %v448, %v444
    %v513 = vpack.c.b16 %v449, %v445
    %v514 = vpack.c.b16 %v450, %v446
    %579 = vmatpush.bf16.msra.mxu0 %v479
    %580 = vmatpush.bf16.msra.mxu0 %v475
    %581 = vmatpush.bf16.msra.mxu0 %v471
    %582 = vmatpush.bf16.msra.mxu0 %v467
    %583 = vmatpush.bf16.msra.mxu0 %v463
    %584 = vmatpush.bf16.msra.mxu0 %v459
    %585 = vmatpush.bf16.msra.mxu0 %v455
    %586 = vmatpush.bf16.msra.mxu0 %v451
    %587 = vmatmul.bf16.gmra.mxu0 %v183
    %v588 = vpop.f32.mrf.mxu0
    %v589 = vadd.f32 %v251, %v588
    %v590 = vpop.f32.mrf.mxu0
    %591 = vdwg.mxu0
    %592 = vmatpush.bf16.msra.mxu0 %v511
    %593 = vmatpush.bf16.msra.mxu0 %v507
    %594 = vmatpush.bf16.msra.mxu0 %v503
    %595 = vmatpush.bf16.msra.mxu0 %v499
    %596 = vmatpush.bf16.msra.mxu0 %v495
    %597 = vmatpush.bf16.msra.mxu0 %v491
    %598 = vmatpush.bf16.msra.mxu0 %v487
    %599 = vmatpush.bf16.msra.mxu0 %v483
    %600 = vmatmul.bf16.gmra.mxu0 %v184
    %v601 = vpop.f32.mrf.mxu0
    %v602 = vadd.f32 %v589, %v601
    %v603 = vpop.f32.mrf.mxu0
    %604 = vdwg.mxu0
    %605 = vmatpush.bf16.msra.mxu0 %v480
    %606 = vmatpush.bf16.msra.mxu0 %v476
    %607 = vmatpush.bf16.msra.mxu0 %v472
    %608 = vmatpush.bf16.msra.mxu0 %v468
    %609 = vmatpush.bf16.msra.mxu0 %v464
    %610 = vmatpush.bf16.msra.mxu0 %v460
    %611 = vmatpush.bf16.msra.mxu0 %v456
    %612 = vmatpush.bf16.msra.mxu0 %v452
    %613 = vmatmul.bf16.gmra.mxu0 %v183
    %v614 = vpop.f32.mrf.mxu0
    %v615 = vadd.f32 %v252, %v614
    %v616 = vpop.f32.mrf.mxu0
    %617 = vdwg.mxu0
    %618 = vmatpush.bf16.msra.mxu0 %v512
    %619 = vmatpush.bf16.msra.mxu0 %v508
    %620 = vmatpush.bf16.msra.mxu0 %v504
    %621 = vmatpush.bf16.msra.mxu0 %v500
    %622 = vmatpush.bf16.msra.mxu0 %v496
    %623 = vmatpush.bf16.msra.mxu0 %v492
    %624 = vmatpush.bf16.msra.mxu0 %v488
    %625 = vmatpush.bf16.msra.mxu0 %v484
    %626 = vmatmul.bf16.gmra.mxu0 %v184
    %v627 = vpop.f32.mrf.mxu0
    %v628 = vadd.f32 %v615, %v627
    %v629 = vpop.f32.mrf.mxu0
    %630 = vdwg.mxu0
    %631 = vmatpush.bf16.msra.mxu0 %v481
    %632 = vmatpush.bf16.msra.mxu0 %v477
    %633 = vmatpush.bf16.msra.mxu0 %v473
    %634 = vmatpush.bf16.msra.mxu0 %v469
    %635 = vmatpush.bf16.msra.mxu0 %v465
    %636 = vmatpush.bf16.msra.mxu0 %v461
    %637 = vmatpush.bf16.msra.mxu0 %v457
    %638 = vmatpush.bf16.msra.mxu0 %v453
    %639 = vmatmul.bf16.gmra.mxu0 %v183
    %v640 = vpop.f32.mrf.mxu0
    %v641 = vadd.f32 %v253, %v640
    %v642 = vpop.f32.mrf.mxu0
    %643 = vdwg.mxu0
    %644 = vmatpush.bf16.msra.mxu0 %v513
    %645 = vmatpush.bf16.msra.mxu0 %v509
    %646 = vmatpush.bf16.msra.mxu0 %v505
    %647 = vmatpush.bf16.msra.mxu0 %v501
    %648 = vmatpush.bf16.msra.mxu0 %v497
    %649 = vmatpush.bf16.msra.mxu0 %v493
    %650 = vmatpush.bf16.msra.mxu0 %v489
    %651 = vmatpush.bf16.msra.mxu0 %v485
    %652 = vmatmul.bf16.gmra.mxu0 %v184
    %v653 = vpop.f32.mrf.mxu0
    %v654 = vadd.f32 %v641, %v653
    %v655 = vpop.f32.mrf.mxu0
    %656 = vdwg.mxu0
    %657 = vmatpush.bf16.msra.mxu0 %v482
    %658 = vmatpush.bf16.msra.mxu0 %v478
    %659 = vmatpush.bf16.msra.mxu0 %v474
    %660 = vmatpush.bf16.msra.mxu0 %v470
    %661 = vmatpush.bf16.msra.mxu0 %v466
    %662 = vmatpush.bf16.msra.mxu0 %v462
    %663 = vmatpush.bf16.msra.mxu0 %v458
    %664 = vmatpush.bf16.msra.mxu0 %v454
    %665 = vmatmul.bf16.gmra.mxu0 %v183
    %v666 = vpop.f32.mrf.mxu0
    %v667 = vadd.f32 %v254, %v666
    %v668 = vpop.f32.mrf.mxu0
    %669 = vdwg.mxu0
    %670 = vmatpush.bf16.msra.mxu0 %v514
    %671 = vmatpush.bf16.msra.mxu0 %v510
    %672 = vmatpush.bf16.msra.mxu0 %v506
    %673 = vmatpush.bf16.msra.mxu0 %v502
    %674 = vmatpush.bf16.msra.mxu0 %v498
    %675 = vmatpush.bf16.msra.mxu0 %v494
    %676 = vmatpush.bf16.msra.mxu0 %v490
    %677 = vmatpush.bf16.msra.mxu0 %v486
    %678 = vmatmul.bf16.gmra.mxu0 %v184
    %v679 = vpop.f32.mrf.mxu0
    %v680 = vadd.f32 %v667, %v679
    %v681 = vpop.f32.mrf.mxu0
    %682 = vdwg.mxu0
    %v683 = vmax.f32 %v602, 0.0
    %v684 = vmax.f32 %v628, 0.0
    %v685 = vmax.f32 %v654, 0.0
    %v686 = vmax.f32 %v680, 0.0
    %v687 = vpack.c.bf16 %v683, %v683
    %v688 = vpack.c.bf16 %v684, %v684
    %v689 = vpack.c.bf16 %v685, %v685
    %v690 = vpack.c.bf16 %v686, %v686
    %v691 = vld [vmem:[#allocation10] sm:$0xf]
    %v692 = vld [vmem:[#allocation10 + $0x4] sm:$0xf]
    %v693 = vld [vmem:[#allocation10 + $0x8] sm:$0xf]
    %v694 = vld [vmem:[#allocation10 + $0xc] sm:$0xf]
    %v695 = vld [vmem:[#allocation10 + $0x10] sm:$0xf]
    %v696 = vld [vmem:[#allocation10 + $0x14] sm:$0xf]
    %v697 = vld [vmem:[#allocation10 + $0x18] sm:$0xf]
    %v698 = vld [vmem:[#allocation10 + $0x1c] sm:$0xf]
    %v699 = vld [vmem:[#allocation10 + $0x20] sm:$0xf]
    %v700 = vld [vmem:[#allocation10 + $0x24] sm:$0xf]
    %v701 = vld [vmem:[#allocation10 + $0x28] sm:$0xf]
    %v702 = vld [vmem:[#allocation10 + $0x2c] sm:$0xf]
    %v703 = vld [vmem:[#allocation10 + $0x30] sm:$0xf]
    %v704 = vld [vmem:[#allocation10 + $0x34] sm:$0xf]
    %v705 = vld [vmem:[#allocation10 + $0x38] sm:$0xf]
    %v706 = vld [vmem:[#allocation10 + $0x3c] sm:$0xf]
    %v707 = vld [vmem:[#allocation10 + $0x40] sm:$0xf]
    %v708 = vld [vmem:[#allocation10 + $0x44] sm:$0xf]
    %v709 = vld [vmem:[#allocation10 + $0x48] sm:$0xf]
    %v710 = vld [vmem:[#allocation10 + $0x4c] sm:$0xf]
    %v711 = vld [vmem:[#allocation10 + $0x50] sm:$0xf]
    %v712 = vld [vmem:[#allocation10 + $0x54] sm:$0xf]
    %v713 = vld [vmem:[#allocation10 + $0x58] sm:$0xf]
    %v714 = vld [vmem:[#allocation10 + $0x5c] sm:$0xf]
    %v715 = vld [vmem:[#allocation10 + $0x60] sm:$0xf]
    %v716 = vld [vmem:[#allocation10 + $0x64] sm:$0xf]
    %v717 = vld [vmem:[#allocation10 + $0x68] sm:$0xf]
    %v718 = vld [vmem:[#allocation10 + $0x6c] sm:$0xf]
    %v719 = vld [vmem:[#allocation10 + $0x70] sm:$0xf]
    %v720 = vld [vmem:[#allocation10 + $0x74] sm:$0xf]
    %v721 = vld [vmem:[#allocation10 + $0x78] sm:$0xf]
    %v722 = vld [vmem:[#allocation10 + $0x7c] sm:$0xf]
    %v723 = vld [vmem:[#allocation10 + $0x80] sm:$0xf]
    %v724 = vld [vmem:[#allocation10 + $0x84] sm:$0xf]
    %v725 = vld [vmem:[#allocation10 + $0x88] sm:$0xf]
    %v726 = vld [vmem:[#allocation10 + $0x8c] sm:$0xf]
    %v727 = vld [vmem:[#allocation10 + $0x90] sm:$0xf]
    %v728 = vld [vmem:[#allocation10 + $0x94] sm:$0xf]
    %v729 = vld [vmem:[#allocation10 + $0x98] sm:$0xf]
    %v730 = vld [vmem:[#allocation10 + $0x9c] sm:$0xf]
    %v731 = vld [vmem:[#allocation10 + $0xa0] sm:$0xf]
    %v732 = vld [vmem:[#allocation10 + $0xa4] sm:$0xf]
    %v733 = vld [vmem:[#allocation10 + $0xa8] sm:$0xf]
    %v734 = vld [vmem:[#allocation10 + $0xac] sm:$0xf]
    %v735 = vld [vmem:[#allocation10 + $0xb0] sm:$0xf]
    %v736 = vld [vmem:[#allocation10 + $0xb4] sm:$0xf]
    %v737 = vld [vmem:[#allocation10 + $0xb8] sm:$0xf]
    %v738 = vld [vmem:[#allocation10 + $0xbc] sm:$0xf]
    %v739 = vld [vmem:[#allocation10 + $0xc0] sm:$0xf]
    %v740 = vld [vmem:[#allocation10 + $0xc4] sm:$0xf]
    %v741 = vld [vmem:[#allocation10 + $0xc8] sm:$0xf]
    %v742 = vld [vmem:[#allocation10 + $0xcc] sm:$0xf]
    %v743 = vld [vmem:[#allocation10 + $0xd0] sm:$0xf]
    %v744 = vld [vmem:[#allocation10 + $0xd4] sm:$0xf]
    %v745 = vld [vmem:[#allocation10 + $0xd8] sm:$0xf]
    %v746 = vld [vmem:[#allocation10 + $0xdc] sm:$0xf]
    %v747 = vld [vmem:[#allocation10 + $0xe0] sm:$0xf]
    %v748 = vld [vmem:[#allocation10 + $0xe4] sm:$0xf]
    %v749 = vld [vmem:[#allocation10 + $0xe8] sm:$0xf]
    %v750 = vld [vmem:[#allocation10 + $0xec] sm:$0xf]
    %v751 = vld [vmem:[#allocation10 + $0xf0] sm:$0xf]
    %v752 = vld [vmem:[#allocation10 + $0xf4] sm:$0xf]
    %v753 = vld [vmem:[#allocation10 + $0xf8] sm:$0xf]
    %v754 = vld [vmem:[#allocation10 + $0xfc] sm:$0xf]
    %v755 = vld [vmem:[#allocation11] sm:$0x1]
    %v757 = vperm.slane %v755, 0
    %v823 = vunpack.c.l.b16 %v691
    %v824 = vunpack.c.l.b16 %v692
    %v825 = vunpack.c.l.b16 %v693
    %v826 = vunpack.c.l.b16 %v694
    %v827 = vunpack.c.l.b16 %v695
    %v828 = vunpack.c.l.b16 %v696
    %v829 = vunpack.c.l.b16 %v697
    %v830 = vunpack.c.l.b16 %v698
    %v831 = vunpack.c.l.b16 %v699
    %v832 = vunpack.c.l.b16 %v700
    %v833 = vunpack.c.l.b16 %v701
    %v834 = vunpack.c.l.b16 %v702
    %v835 = vunpack.c.l.b16 %v703
    %v836 = vunpack.c.l.b16 %v704
    %v837 = vunpack.c.l.b16 %v705
    %v838 = vunpack.c.l.b16 %v706
    %v839 = vunpack.c.l.b16 %v707
    %v840 = vunpack.c.l.b16 %v708
    %v841 = vunpack.c.l.b16 %v709
    %v842 = vunpack.c.l.b16 %v710
    %v843 = vunpack.c.l.b16 %v711
    %v844 = vunpack.c.l.b16 %v712
    %v845 = vunpack.c.l.b16 %v713
    %v846 = vunpack.c.l.b16 %v714
    %v847 = vunpack.c.l.b16 %v715
    %v848 = vunpack.c.l.b16 %v716
    %v849 = vunpack.c.l.b16 %v717
    %v850 = vunpack.c.l.b16 %v718
    %v851 = vunpack.c.l.b16 %v719
    %v852 = vunpack.c.l.b16 %v720
    %v853 = vunpack.c.l.b16 %v721
    %v854 = vunpack.c.l.b16 %v722
    %v855 = vunpack.c.l.b16 %v723
    %v856 = vunpack.c.l.b16 %v724
    %v857 = vunpack.c.l.b16 %v725
    %v858 = vunpack.c.l.b16 %v726
    %v859 = vunpack.c.l.b16 %v727
    %v860 = vunpack.c.l.b16 %v728
    %v861 = vunpack.c.l.b16 %v729
    %v862 = vunpack.c.l.b16 %v730
    %v863 = vunpack.c.l.b16 %v731
    %v864 = vunpack.c.l.b16 %v732
    %v865 = vunpack.c.l.b16 %v733
    %v866 = vunpack.c.l.b16 %v734
    %v867 = vunpack.c.l.b16 %v735
    %v868 = vunpack.c.l.b16 %v736
    %v869 = vunpack.c.l.b16 %v737
    %v870 = vunpack.c.l.b16 %v738
    %v871 = vunpack.c.l.b16 %v739
    %v872 = vunpack.c.l.b16 %v740
    %v873 = vunpack.c.l.b16 %v741
    %v874 = vunpack.c.l.b16 %v742
    %v875 = vunpack.c.l.b16 %v743
    %v876 = vunpack.c.l.b16 %v744
    %v877 = vunpack.c.l.b16 %v745
    %v878 = vunpack.c.l.b16 %v746
    %v879 = vunpack.c.l.b16 %v747
    %v880 = vunpack.c.l.b16 %v748
    %v881 = vunpack.c.l.b16 %v749
    %v882 = vunpack.c.l.b16 %v750
    %v883 = vunpack.c.l.b16 %v751
    %v884 = vunpack.c.l.b16 %v752
    %v885 = vunpack.c.l.b16 %v753
    %v886 = vunpack.c.l.b16 %v754
    %v887 = vpack.c.b16 %v824, %v823
    %v888 = vpack.c.b16 %v826, %v825
    %v889 = vpack.c.b16 %v828, %v827
    %v890 = vpack.c.b16 %v830, %v829
    %v891 = vpack.c.b16 %v832, %v831
    %v892 = vpack.c.b16 %v834, %v833
    %v893 = vpack.c.b16 %v836, %v835
    %v894 = vpack.c.b16 %v838, %v837
    %v895 = vpack.c.b16 %v840, %v839
    %v896 = vpack.c.b16 %v842, %v841
    %v897 = vpack.c.b16 %v844, %v843
    %v898 = vpack.c.b16 %v846, %v845
    %v899 = vpack.c.b16 %v848, %v847
    %v900 = vpack.c.b16 %v850, %v849
    %v901 = vpack.c.b16 %v852, %v851
    %v902 = vpack.c.b16 %v854, %v853
    %v903 = vpack.c.b16 %v856, %v855
    %v904 = vpack.c.b16 %v858, %v857
    %v905 = vpack.c.b16 %v860, %v859
    %v906 = vpack.c.b16 %v862, %v861
    %v907 = vpack.c.b16 %v864, %v863
    %v908 = vpack.c.b16 %v866, %v865
    %v909 = vpack.c.b16 %v868, %v867
    %v910 = vpack.c.b16 %v870, %v869
    %v911 = vpack.c.b16 %v872, %v871
    %v912 = vpack.c.b16 %v874, %v873
    %v913 = vpack.c.b16 %v876, %v875
    %v914 = vpack.c.b16 %v878, %v877
    %v915 = vpack.c.b16 %v880, %v879
    %v916 = vpack.c.b16 %v882, %v881
    %v917 = vpack.c.b16 %v884, %v883
    %v918 = vpack.c.b16 %v886, %v885
    %951 = vmatpush.bf16.msra.mxu0 %v894
    %952 = vmatpush.bf16.msra.mxu0 %v893
    %953 = vmatpush.bf16.msra.mxu0 %v892
    %954 = vmatpush.bf16.msra.mxu0 %v891
    %955 = vmatpush.bf16.msra.mxu0 %v890
    %956 = vmatpush.bf16.msra.mxu0 %v889
    %957 = vmatpush.bf16.msra.mxu0 %v888
    %958 = vmatpush.bf16.msra.mxu0 %v887
    %959 = vmatmul.bf16.gmra.mxu0 %v687
    %v960 = vpop.f32.mrf.mxu0
    %v961 = vadd.f32 %v757, %v960
    %v962 = vpop.f32.mrf.mxu0
    %963 = vdwg.mxu0
    %964 = vmatpush.bf16.msra.mxu0 %v902
    %965 = vmatpush.bf16.msra.mxu0 %v901
    %966 = vmatpush.bf16.msra.mxu0 %v900
    %967 = vmatpush.bf16.msra.mxu0 %v899
    %968 = vmatpush.bf16.msra.mxu0 %v898
    %969 = vmatpush.bf16.msra.mxu0 %v897
    %970 = vmatpush.bf16.msra.mxu0 %v896
    %971 = vmatpush.bf16.msra.mxu0 %v895
    %972 = vmatmul.bf16.gmra.mxu0 %v688
    %v973 = vpop.f32.mrf.mxu0
    %v974 = vadd.f32 %v961, %v973
    %v975 = vpop.f32.mrf.mxu0
    %976 = vdwg.mxu0
    %977 = vmatpush.bf16.msra.mxu0 %v910
    %978 = vmatpush.bf16.msra.mxu0 %v909
    %979 = vmatpush.bf16.msra.mxu0 %v908
    %980 = vmatpush.bf16.msra.mxu0 %v907
    %981 = vmatpush.bf16.msra.mxu0 %v906
    %982 = vmatpush.bf16.msra.mxu0 %v905
    %983 = vmatpush.bf16.msra.mxu0 %v904
    %984 = vmatpush.bf16.msra.mxu0 %v903
    %985 = vmatmul.bf16.gmra.mxu0 %v689
    %v986 = vpop.f32.mrf.mxu0
    %v987 = vadd.f32 %v974, %v986
    %v988 = vpop.f32.mrf.mxu0
    %989 = vdwg.mxu0
    %990 = vmatpush.bf16.msra.mxu0 %v918
    %991 = vmatpush.bf16.msra.mxu0 %v917
    %992 = vmatpush.bf16.msra.mxu0 %v916
    %993 = vmatpush.bf16.msra.mxu0 %v915
    %994 = vmatpush.bf16.msra.mxu0 %v914
    %995 = vmatpush.bf16.msra.mxu0 %v913
    %996 = vmatpush.bf16.msra.mxu0 %v912
    %997 = vmatpush.bf16.msra.mxu0 %v911
    %998 = vmatmul.bf16.gmra.mxu0 %v690
    %v999 = vpop.f32.mrf.mxu0
    %v1000 = vadd.f32 %v987, %v999
    %v1001 = vpop.f32.mrf.mxu0
    %1002 = vdwg.mxu0
    %v1003 = vpack.c.bf16 %v1000, %v1000
    %v1004 = vld [vmem:[#allocation13] sm:$0xff]
    %v1005 = vld [vmem:[#allocation13 + $0x8] sm:$0xff]
    %v1006 = vld [vmem:[#allocation13 + $0x10] sm:$0xff]
    %v1007 = vld [vmem:[#allocation13 + $0x18] sm:$0xff]
    %v1008 = vld [vmem:[#allocation13 + $0x20] sm:$0xff]
    %v1009 = vld [vmem:[#allocation13 + $0x28] sm:$0xff]
    %v1010 = vld [vmem:[#allocation13 + $0x30] sm:$0xff]
    %v1011 = vld [vmem:[#allocation13 + $0x38] sm:$0xff]
    %v1012 = vld [vmem:[#allocation13 + $0x40] sm:$0xff]
    %v1013 = vld [vmem:[#allocation13 + $0x48] sm:$0xff]
    %v1014 = vld [vmem:[#allocation13 + $0x50] sm:$0xff]
    %v1015 = vld [vmem:[#allocation13 + $0x58] sm:$0xff]
    %v1016 = vld [vmem:[#allocation13 + $0x60] sm:$0xff]
    %v1017 = vld [vmem:[#allocation13 + $0x68] sm:$0xff]
    %v1018 = vld [vmem:[#allocation13 + $0x70] sm:$0xff]
    %v1019 = vld [vmem:[#allocation13 + $0x78] sm:$0xff]
    %v1020 = vld [vmem:[#allocation13 + $0x80] sm:$0xff]
    %v1021 = vld [vmem:[#allocation13 + $0x88] sm:$0xff]
    %v1022 = vld [vmem:[#allocation13 + $0x90] sm:$0xff]
    %v1023 = vld [vmem:[#allocation13 + $0x98] sm:$0xff]
    %v1024 = vld [vmem:[#allocation13 + $0xa0] sm:$0xff]
    %v1025 = vld [vmem:[#allocation13 + $0xa8] sm:$0xff]
    %v1026 = vld [vmem:[#allocation13 + $0xb0] sm:$0xff]
    %v1027 = vld [vmem:[#allocation13 + $0xb8] sm:$0xff]
    %v1028 = vld [vmem:[#allocation13 + $0xc0] sm:$0xff]
    %v1029 = vld [vmem:[#allocation13 + $0xc8] sm:$0xff]
    %v1030 = vld [vmem:[#allocation13 + $0xd0] sm:$0xff]
    %v1031 = vld [vmem:[#allocation13 + $0xd8] sm:$0xff]
    %v1032 = vld [vmem:[#allocation13 + $0xe0] sm:$0xff]
    %v1033 = vld [vmem:[#allocation13 + $0xe8] sm:$0xff]
    %v1034 = vld [vmem:[#allocation13 + $0xf0] sm:$0xff]
    %v1035 = vld [vmem:[#allocation13 + $0xf8] sm:$0xff]
    %v1036 = vld [vmem:[%s7] sm:$0xf]
    %v1038 = vperm.slane %v1036, 0
    %v1039 = vperm.slane %v1036, 1
    %v1040 = vperm.slane %v1036, 2
    %v1041 = vperm.slane %v1036, 3
    %v1078 = vunpack.c.l.b16 %v1004
    %v1079 = vunpack.c.h.b16 %v1004
    %v1080 = vunpack.c.l.b16 %v1005
    %v1081 = vunpack.c.h.b16 %v1005
    %v1082 = vunpack.c.l.b16 %v1006
    %v1083 = vunpack.c.h.b16 %v1006
    %v1084 = vunpack.c.l.b16 %v1007
    %v1085 = vunpack.c.h.b16 %v1007
    %v1086 = vunpack.c.l.b16 %v1008
    %v1087 = vunpack.c.h.b16 %v1008
    %v1088 = vunpack.c.l.b16 %v1009
    %v1089 = vunpack.c.h.b16 %v1009
    %v1090 = vunpack.c.l.b16 %v1010
    %v1091 = vunpack.c.h.b16 %v1010
    %v1092 = vunpack.c.l.b16 %v1011
    %v1093 = vunpack.c.h.b16 %v1011
    %v1094 = vunpack.c.l.b16 %v1012
    %v1095 = vunpack.c.h.b16 %v1012
    %v1096 = vunpack.c.l.b16 %v1013
    %v1097 = vunpack.c.h.b16 %v1013
    %v1098 = vunpack.c.l.b16 %v1014
    %v1099 = vunpack.c.h.b16 %v1014
    %v1100 = vunpack.c.l.b16 %v1015
    %v1101 = vunpack.c.h.b16 %v1015
    %v1102 = vunpack.c.l.b16 %v1016
    %v1103 = vunpack.c.h.b16 %v1016
    %v1104 = vunpack.c.l.b16 %v1017
    %v1105 = vunpack.c.h.b16 %v1017
    %v1106 = vunpack.c.l.b16 %v1018
    %v1107 = vunpack.c.h.b16 %v1018
    %v1108 = vunpack.c.l.b16 %v1019
    %v1109 = vunpack.c.h.b16 %v1019
    %v1110 = vunpack.c.l.b16 %v1020
    %v1111 = vunpack.c.h.b16 %v1020
    %v1112 = vunpack.c.l.b16 %v1021
    %v1113 = vunpack.c.h.b16 %v1021
    %v1114 = vunpack.c.l.b16 %v1022
    %v1115 = vunpack.c.h.b16 %v1022
    %v1116 = vunpack.c.l.b16 %v1023
    %v1117 = vunpack.c.h.b16 %v1023
    %v1118 = vunpack.c.l.b16 %v1024
    %v1119 = vunpack.c.h.b16 %v1024
    %v1120 = vunpack.c.l.b16 %v1025
    %v1121 = vunpack.c.h.b16 %v1025
    %v1122 = vunpack.c.l.b16 %v1026
    %v1123 = vunpack.c.h.b16 %v1026
    %v1124 = vunpack.c.l.b16 %v1027
    %v1125 = vunpack.c.h.b16 %v1027
    %v1126 = vunpack.c.l.b16 %v1028
    %v1127 = vunpack.c.h.b16 %v1028
    %v1128 = vunpack.c.l.b16 %v1029
    %v1129 = vunpack.c.h.b16 %v1029
    %v1130 = vunpack.c.l.b16 %v1030
    %v1131 = vunpack.c.h.b16 %v1030
    %v1132 = vunpack.c.l.b16 %v1031
    %v1133 = vunpack.c.h.b16 %v1031
    %v1134 = vunpack.c.l.b16 %v1032
    %v1135 = vunpack.c.h.b16 %v1032
    %v1136 = vunpack.c.l.b16 %v1033
    %v1137 = vunpack.c.h.b16 %v1033
    %v1138 = vunpack.c.l.b16 %v1034
    %v1139 = vunpack.c.h.b16 %v1034
    %v1140 = vunpack.c.l.b16 %v1035
    %v1141 = vunpack.c.h.b16 %v1035
    %v1142 = vpack.c.b16 %v1082, %v1078
    %v1143 = vpack.c.b16 %v1083, %v1079
    %v1144 = vpack.c.b16 %v1084, %v1080
    %v1145 = vpack.c.b16 %v1085, %v1081
    %v1146 = vpack.c.b16 %v1090, %v1086
    %v1147 = vpack.c.b16 %v1091, %v1087
    %v1148 = vpack.c.b16 %v1092, %v1088
    %v1149 = vpack.c.b16 %v1093, %v1089
    %v1150 = vpack.c.b16 %v1098, %v1094
    %v1151 = vpack.c.b16 %v1099, %v1095
    %v1152 = vpack.c.b16 %v1100, %v1096
    %v1153 = vpack.c.b16 %v1101, %v1097
    %v1154 = vpack.c.b16 %v1106, %v1102
    %v1155 = vpack.c.b16 %v1107, %v1103
    %v1156 = vpack.c.b16 %v1108, %v1104
    %v1157 = vpack.c.b16 %v1109, %v1105
    %v1158 = vpack.c.b16 %v1114, %v1110
    %v1159 = vpack.c.b16 %v1115, %v1111
    %v1160 = vpack.c.b16 %v1116, %v1112
    %v1161 = vpack.c.b16 %v1117, %v1113
    %v1162 = vpack.c.b16 %v1122, %v1118
    %v1163 = vpack.c.b16 %v1123, %v1119
    %v1164 = vpack.c.b16 %v1124, %v1120
    %v1165 = vpack.c.b16 %v1125, %v1121
    %v1166 = vpack.c.b16 %v1130, %v1126
    %v1167 = vpack.c.b16 %v1131, %v1127
    %v1168 = vpack.c.b16 %v1132, %v1128
    %v1169 = vpack.c.b16 %v1133, %v1129
    %v1170 = vpack.c.b16 %v1138, %v1134
    %v1171 = vpack.c.b16 %v1139, %v1135
    %v1172 = vpack.c.b16 %v1140, %v1136
    %v1173 = vpack.c.b16 %v1141, %v1137
    %1206 = vmatpush.bf16.msra.mxu0 %v1170
    %1207 = vmatpush.bf16.msra.mxu0 %v1166
    %1208 = vmatpush.bf16.msra.mxu0 %v1162
    %1209 = vmatpush.bf16.msra.mxu0 %v1158
    %1210 = vmatpush.bf16.msra.mxu0 %v1154
    %1211 = vmatpush.bf16.msra.mxu0 %v1150
    %1212 = vmatpush.bf16.msra.mxu0 %v1146
    %1213 = vmatpush.bf16.msra.mxu0 %v1142
    %1214 = vmatmul.bf16.gmra.mxu0 %v1003
    %v1215 = vpop.f32.mrf.mxu0
    %v1216 = vadd.f32 %v1038, %v1215
    %v1217 = vpop.f32.mrf.mxu0
    %1218 = vdwg.mxu0
    %1219 = vmatpush.bf16.msra.mxu0 %v1171
    %1220 = vmatpush.bf16.msra.mxu0 %v1167
    %1221 = vmatpush.bf16.msra.mxu0 %v1163
    %1222 = vmatpush.bf16.msra.mxu0 %v1159
    %1223 = vmatpush.bf16.msra.mxu0 %v1155
    %1224 = vmatpush.bf16.msra.mxu0 %v1151
    %1225 = vmatpush.bf16.msra.mxu0 %v1147
    %1226 = vmatpush.bf16.msra.mxu0 %v1143
    %1227 = vmatmul.bf16.gmra.mxu0 %v1003
    %v1228 = vpop.f32.mrf.mxu0
    %v1229 = vadd.f32 %v1039, %v1228
    %v1230 = vpop.f32.mrf.mxu0
    %1231 = vdwg.mxu0
    %1232 = vmatpush.bf16.msra.mxu0 %v1172
    %1233 = vmatpush.bf16.msra.mxu0 %v1168
    %1234 = vmatpush.bf16.msra.mxu0 %v1164
    %1235 = vmatpush.bf16.msra.mxu0 %v1160
    %1236 = vmatpush.bf16.msra.mxu0 %v1156
    %1237 = vmatpush.bf16.msra.mxu0 %v1152
    %1238 = vmatpush.bf16.msra.mxu0 %v1148
    %1239 = vmatpush.bf16.msra.mxu0 %v1144
    %1240 = vmatmul.bf16.gmra.mxu0 %v1003
    %v1241 = vpop.f32.mrf.mxu0
    %v1242 = vadd.f32 %v1040, %v1241
    %v1243 = vpop.f32.mrf.mxu0
    %1244 = vdwg.mxu0
    %1245 = vmatpush.bf16.msra.mxu0 %v1173
    %1246 = vmatpush.bf16.msra.mxu0 %v1169
    %1247 = vmatpush.bf16.msra.mxu0 %v1165
    %1248 = vmatpush.bf16.msra.mxu0 %v1161
    %1249 = vmatpush.bf16.msra.mxu0 %v1157
    %1250 = vmatpush.bf16.msra.mxu0 %v1153
    %1251 = vmatpush.bf16.msra.mxu0 %v1149
    %1252 = vmatpush.bf16.msra.mxu0 %v1145
    %1253 = vmatmul.bf16.gmra.mxu0 %v1003
    %v1254 = vpop.f32.mrf.mxu0
    %v1255 = vadd.f32 %v1041, %v1254
    %v1256 = vpop.f32.mrf.mxu0
    %1257 = vdwg.mxu0
    %v1258 = vmax.f32 %v1216, 0.0
    %v1259 = vmax.f32 %v1229, 0.0
    %v1260 = vmax.f32 %v1242, 0.0
    %v1261 = vmax.f32 %v1255, 0.0
    %v1262 = vpack.c.bf16 %v1258, %v1258
    %v1263 = vpack.c.bf16 %v1259, %v1259
    %v1264 = vpack.c.bf16 %v1260, %v1260
    %v1265 = vpack.c.bf16 %v1261, %v1261
    %v1266 = vld [vmem:[#allocation14] sm:$0xff]
    %v1267 = vld [vmem:[#allocation14 + $0x8] sm:$0xff]
    %v1268 = vld [vmem:[#allocation14 + $0x10] sm:$0xff]
    %v1269 = vld [vmem:[#allocation14 + $0x18] sm:$0xff]
    %v1270 = vld [vmem:[#allocation14 + $0x20] sm:$0xff]
    %v1271 = vld [vmem:[#allocation14 + $0x28] sm:$0xff]
    %v1272 = vld [vmem:[#allocation14 + $0x30] sm:$0xff]
    %v1273 = vld [vmem:[#allocation14 + $0x38] sm:$0xff]
    %v1274 = vld [vmem:[#allocation14 + $0x40] sm:$0xff]
    %v1275 = vld [vmem:[#allocation14 + $0x48] sm:$0xff]
    %v1276 = vld [vmem:[#allocation14 + $0x50] sm:$0xff]
    %v1277 = vld [vmem:[#allocation14 + $0x58] sm:$0xff]
    %v1278 = vld [vmem:[#allocation14 + $0x60] sm:$0xff]
    %v1279 = vld [vmem:[#allocation14 + $0x68] sm:$0xff]
    %v1280 = vld [vmem:[#allocation14 + $0x70] sm:$0xff]
    %v1281 = vld [vmem:[#allocation14 + $0x78] sm:$0xff]
    %v1282 = vld [vmem:[#allocation14 + $0x80] sm:$0xff]
    %v1283 = vld [vmem:[#allocation14 + $0x88] sm:$0xff]
    %v1284 = vld [vmem:[#allocation14 + $0x90] sm:$0xff]
    %v1285 = vld [vmem:[#allocation14 + $0x98] sm:$0xff]
    %v1286 = vld [vmem:[#allocation14 + $0xa0] sm:$0xff]
    %v1287 = vld [vmem:[#allocation14 + $0xa8] sm:$0xff]
    %v1288 = vld [vmem:[#allocation14 + $0xb0] sm:$0xff]
    %v1289 = vld [vmem:[#allocation14 + $0xb8] sm:$0xff]
    %v1290 = vld [vmem:[#allocation14 + $0xc0] sm:$0xff]
    %v1291 = vld [vmem:[#allocation14 + $0xc8] sm:$0xff]
    %v1292 = vld [vmem:[#allocation14 + $0xd0] sm:$0xff]
    %v1293 = vld [vmem:[#allocation14 + $0xd8] sm:$0xff]
    %v1294 = vld [vmem:[#allocation14 + $0xe0] sm:$0xff]
    %v1295 = vld [vmem:[#allocation14 + $0xe8] sm:$0xff]
    %v1296 = vld [vmem:[#allocation14 + $0xf0] sm:$0xff]
    %v1297 = vld [vmem:[#allocation14 + $0xf8] sm:$0xff]
    %v1298 = vld [vmem:[#allocation14 + $0x100] sm:$0xff]
    %v1299 = vld [vmem:[#allocation14 + $0x108] sm:$0xff]
    %v1300 = vld [vmem:[#allocation14 + $0x110] sm:$0xff]
    %v1301 = vld [vmem:[#allocation14 + $0x118] sm:$0xff]
    %v1302 = vld [vmem:[#allocation14 + $0x120] sm:$0xff]
    %v1303 = vld [vmem:[#allocation14 + $0x128] sm:$0xff]
    %v1304 = vld [vmem:[#allocation14 + $0x130] sm:$0xff]
    %v1305 = vld [vmem:[#allocation14 + $0x138] sm:$0xff]
    %v1306 = vld [vmem:[#allocation14 + $0x140] sm:$0xff]
    %v1307 = vld [vmem:[#allocation14 + $0x148] sm:$0xff]
    %v1308 = vld [vmem:[#allocation14 + $0x150] sm:$0xff]
    %v1309 = vld [vmem:[#allocation14 + $0x158] sm:$0xff]
    %v1310 = vld [vmem:[#allocation14 + $0x160] sm:$0xff]
    %v1311 = vld [vmem:[#allocation14 + $0x168] sm:$0xff]
    %v1312 = vld [vmem:[#allocation14 + $0x170] sm:$0xff]
    %v1313 = vld [vmem:[#allocation14 + $0x178] sm:$0xff]
    %v1314 = vld [vmem:[#allocation14 + $0x180] sm:$0xff]
    %v1315 = vld [vmem:[#allocation14 + $0x188] sm:$0xff]
    %v1316 = vld [vmem:[#allocation14 + $0x190] sm:$0xff]
    %v1317 = vld [vmem:[#allocation14 + $0x198] sm:$0xff]
    %v1318 = vld [vmem:[#allocation14 + $0x1a0] sm:$0xff]
    %v1319 = vld [vmem:[#allocation14 + $0x1a8] sm:$0xff]
    %v1320 = vld [vmem:[#allocation14 + $0x1b0] sm:$0xff]
    %v1321 = vld [vmem:[#allocation14 + $0x1b8] sm:$0xff]
    %v1322 = vld [vmem:[#allocation14 + $0x1c0] sm:$0xff]
    %v1323 = vld [vmem:[#allocation14 + $0x1c8] sm:$0xff]
    %v1324 = vld [vmem:[#allocation14 + $0x1d0] sm:$0xff]
    %v1325 = vld [vmem:[#allocation14 + $0x1d8] sm:$0xff]
    %v1326 = vld [vmem:[#allocation14 + $0x1e0] sm:$0xff]
    %v1327 = vld [vmem:[#allocation14 + $0x1e8] sm:$0xff]
    %v1328 = vld [vmem:[#allocation14 + $0x1f0] sm:$0xff]
    %v1329 = vld [vmem:[#allocation14 + $0x1f8] sm:$0xff]
    %v1330 = vld [vmem:[%s9] sm:$0x3]
    %v1332 = vperm.slane %v1330, 0
    %v1333 = vperm.slane %v1330, 1
    %v1400 = vunpack.c.l.b16 %v1266
    %v1401 = vunpack.c.h.b16 %v1266
    %v1402 = vunpack.c.l.b16 %v1267
    %v1403 = vunpack.c.h.b16 %v1267
    %v1404 = vunpack.c.l.b16 %v1268
    %v1405 = vunpack.c.h.b16 %v1268
    %v1406 = vunpack.c.l.b16 %v1269
    %v1407 = vunpack.c.h.b16 %v1269
    %v1408 = vunpack.c.l.b16 %v1270
    %v1409 = vunpack.c.h.b16 %v1270
    %v1410 = vunpack.c.l.b16 %v1271
    %v1411 = vunpack.c.h.b16 %v1271
    %v1412 = vunpack.c.l.b16 %v1272
    %v1413 = vunpack.c.h.b16 %v1272
    %v1414 = vunpack.c.l.b16 %v1273
    %v1415 = vunpack.c.h.b16 %v1273
    %v1416 = vunpack.c.l.b16 %v1274
    %v1417 = vunpack.c.h.b16 %v1274
    %v1418 = vunpack.c.l.b16 %v1275
    %v1419 = vunpack.c.h.b16 %v1275
    %v1420 = vunpack.c.l.b16 %v1276
    %v1421 = vunpack.c.h.b16 %v1276
    %v1422 = vunpack.c.l.b16 %v1277
    %v1423 = vunpack.c.h.b16 %v1277
    %v1424 = vunpack.c.l.b16 %v1278
    %v1425 = vunpack.c.h.b16 %v1278
    %v1426 = vunpack.c.l.b16 %v1279
    %v1427 = vunpack.c.h.b16 %v1279
    %v1428 = vunpack.c.l.b16 %v1280
    %v1429 = vunpack.c.h.b16 %v1280
    %v1430 = vunpack.c.l.b16 %v1281
    %v1431 = vunpack.c.h.b16 %v1281
    %v1432 = vunpack.c.l.b16 %v1282
    %v1433 = vunpack.c.h.b16 %v1282
    %v1434 = vunpack.c.l.b16 %v1283
    %v1435 = vunpack.c.h.b16 %v1283
    %v1436 = vunpack.c.l.b16 %v1284
    %v1437 = vunpack.c.h.b16 %v1284
    %v1438 = vunpack.c.l.b16 %v1285
    %v1439 = vunpack.c.h.b16 %v1285
    %v1440 = vunpack.c.l.b16 %v1286
    %v1441 = vunpack.c.h.b16 %v1286
    %v1442 = vunpack.c.l.b16 %v1287
    %v1443 = vunpack.c.h.b16 %v1287
    %v1444 = vunpack.c.l.b16 %v1288
    %v1445 = vunpack.c.h.b16 %v1288
    %v1446 = vunpack.c.l.b16 %v1289
    %v1447 = vunpack.c.h.b16 %v1289
    %v1448 = vunpack.c.l.b16 %v1290
    %v1449 = vunpack.c.h.b16 %v1290
    %v1450 = vunpack.c.l.b16 %v1291
    %v1451 = vunpack.c.h.b16 %v1291
    %v1452 = vunpack.c.l.b16 %v1292
    %v1453 = vunpack.c.h.b16 %v1292
    %v1454 = vunpack.c.l.b16 %v1293
    %v1455 = vunpack.c.h.b16 %v1293
    %v1456 = vunpack.c.l.b16 %v1294
    %v1457 = vunpack.c.h.b16 %v1294
    %v1458 = vunpack.c.l.b16 %v1295
    %v1459 = vunpack.c.h.b16 %v1295
    %v1460 = vunpack.c.l.b16 %v1296
    %v1461 = vunpack.c.h.b16 %v1296
    %v1462 = vunpack.c.l.b16 %v1297
    %v1463 = vunpack.c.h.b16 %v1297
    %v1464 = vunpack.c.l.b16 %v1298
    %v1465 = vunpack.c.h.b16 %v1298
    %v1466 = vunpack.c.l.b16 %v1299
    %v1467 = vunpack.c.h.b16 %v1299
    %v1468 = vunpack.c.l.b16 %v1300
    %v1469 = vunpack.c.h.b16 %v1300
    %v1470 = vunpack.c.l.b16 %v1301
    %v1471 = vunpack.c.h.b16 %v1301
    %v1472 = vunpack.c.l.b16 %v1302
    %v1473 = vunpack.c.h.b16 %v1302
    %v1474 = vunpack.c.l.b16 %v1303
    %v1475 = vunpack.c.h.b16 %v1303
    %v1476 = vunpack.c.l.b16 %v1304
    %v1477 = vunpack.c.h.b16 %v1304
    %v1478 = vunpack.c.l.b16 %v1305
    %v1479 = vunpack.c.h.b16 %v1305
    %v1480 = vunpack.c.l.b16 %v1306
    %v1481 = vunpack.c.h.b16 %v1306
    %v1482 = vunpack.c.l.b16 %v1307
    %v1483 = vunpack.c.h.b16 %v1307
    %v1484 = vunpack.c.l.b16 %v1308
    %v1485 = vunpack.c.h.b16 %v1308
    %v1486 = vunpack.c.l.b16 %v1309
    %v1487 = vunpack.c.h.b16 %v1309
    %v1488 = vunpack.c.l.b16 %v1310
    %v1489 = vunpack.c.h.b16 %v1310
    %v1490 = vunpack.c.l.b16 %v1311
    %v1491 = vunpack.c.h.b16 %v1311
    %v1492 = vunpack.c.l.b16 %v1312
    %v1493 = vunpack.c.h.b16 %v1312
    %v1494 = vunpack.c.l.b16 %v1313
    %v1495 = vunpack.c.h.b16 %v1313
    %v1496 = vunpack.c.l.b16 %v1314
    %v1497 = vunpack.c.h.b16 %v1314
    %v1498 = vunpack.c.l.b16 %v1315
    %v1499 = vunpack.c.h.b16 %v1315
    %v1500 = vunpack.c.l.b16 %v1316
    %v1501 = vunpack.c.h.b16 %v1316
    %v1502 = vunpack.c.l.b16 %v1317
    %v1503 = vunpack.c.h.b16 %v1317
    %v1504 = vunpack.c.l.b16 %v1318
    %v1505 = vunpack.c.h.b16 %v1318
    %v1506 = vunpack.c.l.b16 %v1319
    %v1507 = vunpack.c.h.b16 %v1319
    %v1508 = vunpack.c.l.b16 %v1320
    %v1509 = vunpack.c.h.b16 %v1320
    %v1510 = vunpack.c.l.b16 %v1321
    %v1511 = vunpack.c.h.b16 %v1321
    %v1512 = vunpack.c.l.b16 %v1322
    %v1513 = vunpack.c.h.b16 %v1322
    %v1514 = vunpack.c.l.b16 %v1323
    %v1515 = vunpack.c.h.b16 %v1323
    %v1516 = vunpack.c.l.b16 %v1324
    %v1517 = vunpack.c.h.b16 %v1324
    %v1518 = vunpack.c.l.b16 %v1325
    %v1519 = vunpack.c.h.b16 %v1325
    %v1520 = vunpack.c.l.b16 %v1326
    %v1521 = vunpack.c.h.b16 %v1326
    %v1522 = vunpack.c.l.b16 %v1327
    %v1523 = vunpack.c.h.b16 %v1327
    %v1524 = vunpack.c.l.b16 %v1328
    %v1525 = vunpack.c.h.b16 %v1328
    %v1526 = vunpack.c.l.b16 %v1329
    %v1527 = vunpack.c.h.b16 %v1329
    %v1528 = vpack.c.b16 %v1402, %v1400
    %v1529 = vpack.c.b16 %v1403, %v1401
    %v1530 = vpack.c.b16 %v1406, %v1404
    %v1531 = vpack.c.b16 %v1407, %v1405
    %v1532 = vpack.c.b16 %v1410, %v1408
    %v1533 = vpack.c.b16 %v1411, %v1409
    %v1534 = vpack.c.b16 %v1414, %v1412
    %v1535 = vpack.c.b16 %v1415, %v1413
    %v1536 = vpack.c.b16 %v1418, %v1416
    %v1537 = vpack.c.b16 %v1419, %v1417
    %v1538 = vpack.c.b16 %v1422, %v1420
    %v1539 = vpack.c.b16 %v1423, %v1421
    %v1540 = vpack.c.b16 %v1426, %v1424
    %v1541 = vpack.c.b16 %v1427, %v1425
    %v1542 = vpack.c.b16 %v1430, %v1428
    %v1543 = vpack.c.b16 %v1431, %v1429
    %v1544 = vpack.c.b16 %v1434, %v1432
    %v1545 = vpack.c.b16 %v1435, %v1433
    %v1546 = vpack.c.b16 %v1438, %v1436
    %v1547 = vpack.c.b16 %v1439, %v1437
    %v1548 = vpack.c.b16 %v1442, %v1440
    %v1549 = vpack.c.b16 %v1443, %v1441
    %v1550 = vpack.c.b16 %v1446, %v1444
    %v1551 = vpack.c.b16 %v1447, %v1445
    %v1552 = vpack.c.b16 %v1450, %v1448
    %v1553 = vpack.c.b16 %v1451, %v1449
    %v1554 = vpack.c.b16 %v1454, %v1452
    %v1555 = vpack.c.b16 %v1455, %v1453
    %v1556 = vpack.c.b16 %v1458, %v1456
    %v1557 = vpack.c.b16 %v1459, %v1457
    %v1558 = vpack.c.b16 %v1462, %v1460
    %v1559 = vpack.c.b16 %v1463, %v1461
    %v1560 = vpack.c.b16 %v1466, %v1464
    %v1561 = vpack.c.b16 %v1467, %v1465
    %v1562 = vpack.c.b16 %v1470, %v1468
    %v1563 = vpack.c.b16 %v1471, %v1469
    %v1564 = vpack.c.b16 %v1474, %v1472
    %v1565 = vpack.c.b16 %v1475, %v1473
    %v1566 = vpack.c.b16 %v1478, %v1476
    %v1567 = vpack.c.b16 %v1479, %v1477
    %v1568 = vpack.c.b16 %v1482, %v1480
    %v1569 = vpack.c.b16 %v1483, %v1481
    %v1570 = vpack.c.b16 %v1486, %v1484
    %v1571 = vpack.c.b16 %v1487, %v1485
    %v1572 = vpack.c.b16 %v1490, %v1488
    %v1573 = vpack.c.b16 %v1491, %v1489
    %v1574 = vpack.c.b16 %v1494, %v1492
    %v1575 = vpack.c.b16 %v1495, %v1493
    %v1576 = vpack.c.b16 %v1498, %v1496
    %v1577 = vpack.c.b16 %v1499, %v1497
    %v1578 = vpack.c.b16 %v1502, %v1500
    %v1579 = vpack.c.b16 %v1503, %v1501
    %v1580 = vpack.c.b16 %v1506, %v1504
    %v1581 = vpack.c.b16 %v1507, %v1505
    %v1582 = vpack.c.b16 %v1510, %v1508
    %v1583 = vpack.c.b16 %v1511, %v1509
    %v1584 = vpack.c.b16 %v1514, %v1512
    %v1585 = vpack.c.b16 %v1515, %v1513
    %v1586 = vpack.c.b16 %v1518, %v1516
    %v1587 = vpack.c.b16 %v1519, %v1517
    %v1588 = vpack.c.b16 %v1522, %v1520
    %v1589 = vpack.c.b16 %v1523, %v1521
    %v1590 = vpack.c.b16 %v1526, %v1524
    %v1591 = vpack.c.b16 %v1527, %v1525
    %1656 = vmatpush.bf16.msra.mxu0 %v1542
    %1657 = vmatpush.bf16.msra.mxu0 %v1540
    %1658 = vmatpush.bf16.msra.mxu0 %v1538
    %1659 = vmatpush.bf16.msra.mxu0 %v1536
    %1660 = vmatpush.bf16.msra.mxu0 %v1534
    %1661 = vmatpush.bf16.msra.mxu0 %v1532
    %1662 = vmatpush.bf16.msra.mxu0 %v1530
    %1663 = vmatpush.bf16.msra.mxu0 %v1528
    %1664 = vmatmul.bf16.gmra.mxu0 %v1262
    %v1665 = vpop.f32.mrf.mxu0
    %v1666 = vadd.f32 %v1332, %v1665
    %v1667 = vpop.f32.mrf.mxu0
    %1668 = vdwg.mxu0
    %1669 = vmatpush.bf16.msra.mxu0 %v1558
    %1670 = vmatpush.bf16.msra.mxu0 %v1556
    %1671 = vmatpush.bf16.msra.mxu0 %v1554
    %1672 = vmatpush.bf16.msra.mxu0 %v1552
    %1673 = vmatpush.bf16.msra.mxu0 %v1550
    %1674 = vmatpush.bf16.msra.mxu0 %v1548
    %1675 = vmatpush.bf16.msra.mxu0 %v1546
    %1676 = vmatpush.bf16.msra.mxu0 %v1544
    %1677 = vmatmul.bf16.gmra.mxu0 %v1263
    %v1678 = vpop.f32.mrf.mxu0
    %v1679 = vadd.f32 %v1666, %v1678
    %v1680 = vpop.f32.mrf.mxu0
    %1681 = vdwg.mxu0
    %1682 = vmatpush.bf16.msra.mxu0 %v1574
    %1683 = vmatpush.bf16.msra.mxu0 %v1572
    %1684 = vmatpush.bf16.msra.mxu0 %v1570
    %1685 = vmatpush.bf16.msra.mxu0 %v1568
    %1686 = vmatpush.bf16.msra.mxu0 %v1566
    %1687 = vmatpush.bf16.msra.mxu0 %v1564
    %1688 = vmatpush.bf16.msra.mxu0 %v1562
    %1689 = vmatpush.bf16.msra.mxu0 %v1560
    %1690 = vmatmul.bf16.gmra.mxu0 %v1264
    %v1691 = vpop.f32.mrf.mxu0
    %v1692 = vadd.f32 %v1679, %v1691
    %v1693 = vpop.f32.mrf.mxu0
    %1694 = vdwg.mxu0
    %1695 = vmatpush.bf16.msra.mxu0 %v1590
    %1696 = vmatpush.bf16.msra.mxu0 %v1588
    %1697 = vmatpush.bf16.msra.mxu0 %v1586
    %1698 = vmatpush.bf16.msra.mxu0 %v1584
    %1699 = vmatpush.bf16.msra.mxu0 %v1582
    %1700 = vmatpush.bf16.msra.mxu0 %v1580
    %1701 = vmatpush.bf16.msra.mxu0 %v1578
    %1702 = vmatpush.bf16.msra.mxu0 %v1576
    %1703 = vmatmul.bf16.gmra.mxu0 %v1265
    %v1704 = vpop.f32.mrf.mxu0
    %v1705 = vadd.f32 %v1692, %v1704
    %v1706 = vpop.f32.mrf.mxu0
    %1707 = vdwg.mxu0
    %1708 = vmatpush.bf16.msra.mxu0 %v1543
    %1709 = vmatpush.bf16.msra.mxu0 %v1541
    %1710 = vmatpush.bf16.msra.mxu0 %v1539
    %1711 = vmatpush.bf16.msra.mxu0 %v1537
    %1712 = vmatpush.bf16.msra.mxu0 %v1535
    %1713 = vmatpush.bf16.msra.mxu0 %v1533
    %1714 = vmatpush.bf16.msra.mxu0 %v1531
    %1715 = vmatpush.bf16.msra.mxu0 %v1529
    %1716 = vmatmul.bf16.gmra.mxu0 %v1262
    %v1717 = vpop.f32.mrf.mxu0
    %v1718 = vadd.f32 %v1333, %v1717
    %v1719 = vpop.f32.mrf.mxu0
    %1720 = vdwg.mxu0
    %1721 = vmatpush.bf16.msra.mxu0 %v1559
    %1722 = vmatpush.bf16.msra.mxu0 %v1557
    %1723 = vmatpush.bf16.msra.mxu0 %v1555
    %1724 = vmatpush.bf16.msra.mxu0 %v1553
    %1725 = vmatpush.bf16.msra.mxu0 %v1551
    %1726 = vmatpush.bf16.msra.mxu0 %v1549
    %1727 = vmatpush.bf16.msra.mxu0 %v1547
    %1728 = vmatpush.bf16.msra.mxu0 %v1545
    %1729 = vmatmul.bf16.gmra.mxu0 %v1263
    %v1730 = vpop.f32.mrf.mxu0
    %v1731 = vadd.f32 %v1718, %v1730
    %v1732 = vpop.f32.mrf.mxu0
    %1733 = vdwg.mxu0
    %1734 = vmatpush.bf16.msra.mxu0 %v1575
    %1735 = vmatpush.bf16.msra.mxu0 %v1573
    %1736 = vmatpush.bf16.msra.mxu0 %v1571
    %1737 = vmatpush.bf16.msra.mxu0 %v1569
    %1738 = vmatpush.bf16.msra.mxu0 %v1567
    %1739 = vmatpush.bf16.msra.mxu0 %v1565
    %1740 = vmatpush.bf16.msra.mxu0 %v1563
    %1741 = vmatpush.bf16.msra.mxu0 %v1561
    %1742 = vmatmul.bf16.gmra.mxu0 %v1264
    %v1743 = vpop.f32.mrf.mxu0
    %v1744 = vadd.f32 %v1731, %v1743
    %v1745 = vpop.f32.mrf.mxu0
    %1746 = vdwg.mxu0
    %1747 = vmatpush.bf16.msra.mxu0 %v1591
    %1748 = vmatpush.bf16.msra.mxu0 %v1589
    %1749 = vmatpush.bf16.msra.mxu0 %v1587
    %1750 = vmatpush.bf16.msra.mxu0 %v1585
    %1751 = vmatpush.bf16.msra.mxu0 %v1583
    %1752 = vmatpush.bf16.msra.mxu0 %v1581
    %1753 = vmatpush.bf16.msra.mxu0 %v1579
    %1754 = vmatpush.bf16.msra.mxu0 %v1577
    %1755 = vmatmul.bf16.gmra.mxu0 %v1265
    %v1756 = vpop.f32.mrf.mxu0
    %v1757 = vadd.f32 %v1744, %v1756
    %v1758 = vpop.f32.mrf.mxu0
    %1759 = vdwg.mxu0
    %v1760 = vmax.f32 %v1000, 0.0
    %v1761 = vpack.c.bf16 %v1760, %v1760
    %v1762 = vld [vmem:[#allocation16] sm:$0xf]
    %v1763 = vld [vmem:[#allocation16 + $0x4] sm:$0xf]
    %v1764 = vld [vmem:[#allocation16 + $0x8] sm:$0xf]
    %v1765 = vld [vmem:[#allocation16 + $0xc] sm:$0xf]
    %v1766 = vld [vmem:[#allocation16 + $0x10] sm:$0xf]
    %v1767 = vld [vmem:[#allocation16 + $0x14] sm:$0xf]
    %v1768 = vld [vmem:[#allocation16 + $0x18] sm:$0xf]
    %v1769 = vld [vmem:[#allocation16 + $0x1c] sm:$0xf]
    %v1770 = vld [vmem:[#allocation16 + $0x20] sm:$0xf]
    %v1771 = vld [vmem:[#allocation16 + $0x24] sm:$0xf]
    %v1772 = vld [vmem:[#allocation16 + $0x28] sm:$0xf]
    %v1773 = vld [vmem:[#allocation16 + $0x2c] sm:$0xf]
    %v1774 = vld [vmem:[#allocation16 + $0x30] sm:$0xf]
    %v1775 = vld [vmem:[#allocation16 + $0x34] sm:$0xf]
    %v1776 = vld [vmem:[#allocation16 + $0x38] sm:$0xf]
    %v1777 = vld [vmem:[#allocation16 + $0x3c] sm:$0xf]
    %v1778 = vld [vmem:[%s11] sm:$0x1]
    %v1780 = vperm.slane %v1778, 0
    %v1798 = vunpack.c.l.b16 %v1762
    %v1799 = vunpack.c.l.b16 %v1763
    %v1800 = vunpack.c.l.b16 %v1764
    %v1801 = vunpack.c.l.b16 %v1765
    %v1802 = vunpack.c.l.b16 %v1766
    %v1803 = vunpack.c.l.b16 %v1767
    %v1804 = vunpack.c.l.b16 %v1768
    %v1805 = vunpack.c.l.b16 %v1769
    %v1806 = vunpack.c.l.b16 %v1770
    %v1807 = vunpack.c.l.b16 %v1771
    %v1808 = vunpack.c.l.b16 %v1772
    %v1809 = vunpack.c.l.b16 %v1773
    %v1810 = vunpack.c.l.b16 %v1774
    %v1811 = vunpack.c.l.b16 %v1775
    %v1812 = vunpack.c.l.b16 %v1776
    %v1813 = vunpack.c.l.b16 %v1777
    %v1814 = vpack.c.b16 %v1799, %v1798
    %v1815 = vpack.c.b16 %v1801, %v1800
    %v1816 = vpack.c.b16 %v1803, %v1802
    %v1817 = vpack.c.b16 %v1805, %v1804
    %v1818 = vpack.c.b16 %v1807, %v1806
    %v1819 = vpack.c.b16 %v1809, %v1808
    %v1820 = vpack.c.b16 %v1811, %v1810
    %v1821 = vpack.c.b16 %v1813, %v1812
    %1830 = vmatpush.bf16.msra.mxu0 %v1821
    %1831 = vmatpush.bf16.msra.mxu0 %v1820
    %1832 = vmatpush.bf16.msra.mxu0 %v1819
    %1833 = vmatpush.bf16.msra.mxu0 %v1818
    %1834 = vmatpush.bf16.msra.mxu0 %v1817
    %1835 = vmatpush.bf16.msra.mxu0 %v1816
    %1836 = vmatpush.bf16.msra.mxu0 %v1815
    %1837 = vmatpush.bf16.msra.mxu0 %v1814
    %1838 = vmatmul.bf16.gmra.mxu0 %v1761
    %v1839 = vpop.f32.mrf.mxu0
    %v1840 = vadd.f32 %v1780, %v1839
    %v1841 = vpop.f32.mrf.mxu0
    %1842 = vdwg.mxu0
    %1843 = vst [vmem:[#allocation17] sm:$0xff] %v1840
    %s1844 = smul.u32 0, 8
    %v1845 = vlaneseq
    %v1846 = vshrl.u32 %v1845, 7
    %v1847 = vstv %s1844
    %v1848 = vadd.s32 %v1847, %v1846
    %vm1849 = vcmp.lt.s32.totalorder %v1848, 2
    %v1850 = vsel %vm1849, 1, 0
    %v1851 = vcvt.s32.f32 %v1850
    %v1852 = vsub.f32 %v1705, %v181
    %v1853 = vsub.f32 %v1757, %v182
    %v1854 = vld [vmem:[#allocation2] sm:$0x3]
    %v1856 = vperm.slane %v1854, 0
    %v1857 = vperm.slane %v1854, 1
    %v1860 = vmul.f32 %v1852, %v1856
    %v1861 = vmul.f32 %v1853, %v1857
    %v1862 = vmul.f32 %v1860, %v1851
    %v1863 = vmul.f32 %v1861, %v1851
    %v1864 = vmul.f32 %v1862, %v1862
    %v1865 = vmul.f32 %v1863, %v1863
    %v1866 = vadd.f32 %v1864, %v1865
    %1867 = vadd.xlane.f32.xlu0 %v1866
    %v1868 = vpop.xlane.xlu0 %1867
    %v1869 = vrot.slane %v1868, 4
    %v1870 = vadd.f32 %v1868, %v1869
    %v1871 = vrot.slane %v1870, 2
    %v1872 = vadd.f32 %v1870, %v1871
    %v1873 = vrot.slane %v1872, 1
    %v1874 = vadd.f32 %v1872, %v1873
    %s1875 = vtos %v1874
    %v1876 = vstv %s1875
    %vm1877 = vcmask 0
    %1878 = vst.msk [vmem:[#allocation18] sm:$0x1] %vm1877, %v1876
    // Predicated region
    $region86: #{tpu_custom_call.1} parent=1 // pred_check
      _
    $region87: #{tpu_custom_call.1} parent=1 // pred_check_branch
      %1880 = sbr.rel (0) target = $region89
    $region88: #{tpu_custom_call.1} parent=1 // pred_region
      %1882 = vsyncadd [#allocation4], 0
      %s1884 = sshll.u32 [#allocation17], 4
      %s1885 = int_to_ptr.vmem [resolvable:$true] %s1884
      %s1886 = sshll.u32 %s12, 4
      %s1887 = int_to_ptr.hbm [resolvable:$true] %s1886
      %1889 = dma.vmem_to_hbm [thread:$0]  %s1885, 128, %s1887, [#allocation4]
    $region89: #{tpu_custom_call.1} parent=1 // pred_fallthru
      _
    // Predicated region
    $region90: #{tpu_custom_call.1} parent=1 // pred_check
      _
    $region91: #{tpu_custom_call.1} parent=1 // pred_check_branch
      %1891 = sbr.rel (0) target = $region93
    $region92: #{tpu_custom_call.1} parent=1 // pred_region
      %1893 = vsyncadd [#allocation19], 0
      %s1895 = sshll.u32 [#allocation18], 4
      %s1896 = int_to_ptr.vmem [resolvable:$true] %s1895
      %s1897 = sshll.u32 %s13, 4
      %s1898 = int_to_ptr.hbm [resolvable:$true] %s1897
      %1900 = dma.vmem_to_hbm [thread:$0]  %s1896, 16, %s1898, [#allocation19]
    $region93: #{tpu_custom_call.1} parent=1 // pred_fallthru
      _
    // Predicated region
    $region94: #{tpu_custom_call.1} parent=1 // pred_check
      _
    $region95: #{tpu_custom_call.1} parent=1 // pred_check_branch
      %1902 = sbr.rel (0) target = $region97
    $region96: #{tpu_custom_call.1} parent=1 // pred_region
      %1904 = dma.done [#allocation4], 128
    $region97: #{tpu_custom_call.1} parent=1 // pred_fallthru
      _
    // Predicated region
    $region98: #{tpu_custom_call.1} parent=1 // pred_check
      _
    $region99: #{tpu_custom_call.1} parent=1 // pred_check_branch
      %1906 = sbr.rel (0) target = $region101
    $region100: #{tpu_custom_call.1} parent=1 // pred_region
      %1908 = dma.done [#allocation19], 16
    $region101: #{tpu_custom_call.1} parent=1 // pred_fallthru
      _
    %1909 = vsyncpa [#allocation3], 1
    %1910 = vsyncpa [#allocation6], 1
    %1911 = vsyncpa [#allocation9], 1
    %1912 = vsyncpa [#allocation12], 1
    %1913 = vsyncpa [#allocation15], 1
    %1914 = vsyncpa [#allocation4], 1
    %1915 = vsyncpa [#allocation19], 1

</llo_original>
